<compile_context>
chip_gen: v6e
topology: v6e:2x2x1
jax: 0.10.0
libtpu: 0.0.40
codegen_flags: <defaults>
</compile_context>

<pallas_src>
import functools

import jax
import jax.numpy as jnp
from jax import lax
from jax.experimental import pallas as pl
from jax.experimental.pallas import tpu as pltpu

# ---- AutoShape class attributes (module defaults) ----
CONF_THRES = 0.25     # AutoShape.conf
IOU_THRES = 0.45      # AutoShape.iou
AGNOSTIC = False      # AutoShape.agnostic
MAX_DET = 16          # AutoShape.max_det is 1000; shrunk for the small synthetic shapes
MAX_NMS = 128         # upstream max_nms analogue: top-K candidates fed to the O(K^2) stage
MAX_WH = 4096.0       # class-offset trick; assumes image coords < 4096 (upstream uses 7680)
NC = 3                # number of classes of the synthetic model
NO = 5 + NC           # raw outputs per grid cell: xywh + obj + classes
HIDDEN = 32           # synthetic head hidden width

_VMEM_LIMIT = 32 * 1024 * 1024   # explicit scoped-VMEM budget: safe on v5e/v6e/v7x


def _round_up(x, m):
    return ((x + m - 1) // m) * m


# --------------------------------------------------------------------------------------
# Kernel 1: synthetic model head (two bf16 matmuls, /255 folded into w1) + fused YOLO
# decode + obj*cls / max / argmax / xywh->xyxy.  Output rows: [x1,y1,x2,y2,conf,cls].
# Layout: x (C, T), output (6, T) -> HW sits on the 128-lane axis (lane-dense).
# --------------------------------------------------------------------------------------
def _model_kernel(x_ref, w1_ref, b1_ref, w2_ref, b2_ref, o_ref, *,
                  img_w, tile_hw, hw_actual):
    x = x_ref[0]                                                     # (C, T) bf16
    h = jnp.maximum(
        jnp.dot(w1_ref[...], x, preferred_element_type=jnp.float32) + b1_ref[...], 0.0)
    t = jnp.dot(w2_ref[...], h.astype(jnp.bfloat16),
                preferred_element_type=jnp.float32) + b2_ref[...]
    s = jax.nn.sigmoid(t)                                            # (NO, T) f32

    # Global flat pixel index -> grid cell (gx, gy), int32-exact.
    col_i = (lax.broadcasted_iota(jnp.int32, (1, tile_hw), 1)
             + pl.program_id(1) * tile_hw)                           # (1, T) int32
    if (img_w & (img_w - 1)) == 0:                                   # power of two: exact
        shift = img_w.bit_length() - 1
        gx = (col_i & (img_w - 1)).astype(jnp.float32)
        gy = (col_i >> shift).astype(jnp.float32)
    else:
        # TODO(synk): this fallback is exact only while HW < 2^24 (f32 integer range).
        colf = col_i.astype(jnp.float32)
        gy = jnp.floor((colf + 0.5) * (1.0 / float(img_w)))
        gx = colf - gy * float(img_w)

    stride = 1.0                                                     # one cell per pixel
    xc = (s[0:1] * 2.0 - 0.5 + gx) * stride
    yc = (s[1:2] * 2.0 - 0.5 + gy) * stride
    bw = (s[2:3] * 2.0) ** 2 * (4.0 * stride)                        # anchor = 4*stride
    bh = (s[3:4] * 2.0) ** 2 * (4.0 * stride)
    obj = s[4:5]

    # conf = max_c(obj * cls_c), cls = argmax (first max wins, like torch argmax).
    conf = jnp.zeros((1, tile_hw), jnp.float32)
    cls = jnp.zeros((1, tile_hw), jnp.float32)
    for ci in range(NC):
        sc = s[5 + ci:6 + ci] * obj
        better = sc > conf
        cls = jnp.where(better, float(ci), cls)
        conf = jnp.where(better, sc, conf)

    # Tail-padded lanes can never become detections.
    conf = jnp.where(col_i < hw_actual, conf, 0.0)

    half_w = bw * 0.5
    half_h = bh * 0.5
    o_ref[0] = jnp.concatenate(
        [xc - half_w, yc - half_h, xc + half_w, yc + half_h, conf, cls], axis=0)


def run_model(x_soa, w1t, b1t, w2t, b2t, img_w, tile_hw, hw_actual):
    B, C, hw_pad = x_soa.shape
    n_t = hw_pad // tile_hw
    return pl.pallas_call(
        functools.partial(_model_kernel, img_w=img_w, tile_hw=tile_hw,
                          hw_actual=hw_actual),
        out_shape=jax.ShapeDtypeStruct((B, 6, hw_pad), jnp.float32),
        grid=(B, n_t),
        in_specs=[
            pl.BlockSpec((1, C, tile_hw), lambda b, t: (b, 0, t)),
            pl.BlockSpec((HIDDEN, C), lambda b, t: (0, 0)),
            pl.BlockSpec((HIDDEN, 1), lambda b, t: (0, 0)),
            pl.BlockSpec((NO, HIDDEN), lambda b, t: (0, 0)),
            pl.BlockSpec((NO, 1), lambda b, t: (0, 0)),
        ],
        out_specs=pl.BlockSpec((1, 6, tile_hw), lambda b, t: (b, 0, t)),
        compiler_params=pltpu.CompilerParams(
            dimension_semantics=("parallel", "parallel"),
            vmem_limit_bytes=_VMEM_LIMIT),
    )(x_soa, w1t, b1t, w2t, b2t)


# --------------------------------------------------------------------------------------
# Kernel 2: fused pairwise-IoU + greedy NMS.  One program per batch element.
#   rows block: AoS (K, 4), cols block: SoA (4, K)  -> no in-kernel transpose.
#   The K x K (iou > thr) mask is written to VMEM scratch only (never to HBM); the
#   greedy keep loop runs in-kernel (candidates are pre-sorted by descending conf).
#   iou > thr  <=>  inter > thr * union  -> no divide at all.
# --------------------------------------------------------------------------------------
def _nms_kernel(rows_ref, cols_ref, cand_ref, keep_ref, supp_ref):
    r = rows_ref[0]                       # (K, 4)  class-offset xyxy, AoS
    c = cols_ref[0]                       # (4, K)  same boxes, SoA
    x1r, y1r, x2r, y2r = r[:, 0:1], r[:, 1:2], r[:, 2:3], r[:, 3:4]   # (K, 1)
    x1c, y1c, x2c, y2c = c[0:1, :], c[1:2, :], c[2:3, :], c[3:4, :]   # (1, K)
    area_r = (x2r - x1r) * (y2r - y1r)
    area_c = (x2c - x1c) * (y2c - y1c)
    iw = jnp.maximum(jnp.minimum(x2r, x2c) - jnp.maximum(x1r, x1c), 0.0)
    ih = jnp.maximum(jnp.minimum(y2r, y2c) - jnp.maximum(y1r, y1c), 0.0)
    inter = iw * ih
    union = area_r + area_c - inter + 1e-7
    supp_ref[...] = (inter > IOU_THRES * union).astype(jnp.float32)   # (K, K) in VMEM

    cand = cand_ref[0]                                                # (1, K) 0/1
    k = cand.shape[1]
    lane = lax.broadcasted_iota(jnp.int32, (1, k), 1)

    def body(i, keep):
        row_i = supp_ref[pl.ds(i, 1), :]                              # (1, K)
        hit = jnp.sum(jnp.where(lane < i, keep * row_i, 0.0)) > 0.0   # suppressed by a
        return jnp.where(lane == i, jnp.where(hit, 0.0, keep), keep)  # previously-kept box

    keep_ref[0] = lax.fori_loop(0, k, body, cand)


def run_nms(boxes_aos, boxes_soa, cand):
    B, K, _ = boxes_aos.shape
    return pl.pallas_call(
        _nms_kernel,
        out_shape=jax.ShapeDtypeStruct((B, 1, K), jnp.float32),
        grid=(B,),
        in_specs=[
            pl.BlockSpec((1, K, 4), lambda b: (b, 0, 0)),
            pl.BlockSpec((1, 4, K), lambda b: (b, 0, 0)),
            pl.BlockSpec((1, 1, K), lambda b: (b, 0, 0)),
        ],
        out_specs=pl.BlockSpec((1, 1, K), lambda b: (b, 0, 0)),
        scratch_shapes=[pltpu.VMEM((K, K), jnp.float32)],
        compiler_params=pltpu.CompilerParams(
            dimension_semantics=("parallel",),
            vmem_limit_bytes=_VMEM_LIMIT),
    )(boxes_aos, boxes_soa, cand)


# --------------------------------------------------------------------------------------
# Kernel 3: Detections math (scale_boxes clip, xyxy2xywh, /gn normalization).
# Single program (grid=()), SoA layout (6, M) with M padded to a multiple of 128 so all
# stores are lane-dense; 1/gn precomputed in the wrapper.
# --------------------------------------------------------------------------------------
def _detections_kernel(d_ref, gn_ref, inv_gn_ref,
                       xyxy_ref, xywh_ref, xyxyn_ref, xywhn_ref):
    d = d_ref[...]                        # (6, M) rows: x1,y1,x2,y2,conf,cls
    gn = gn_ref[...]                      # (6, 1) [W, H, W, H, 1, 1]
    inv_gn = inv_gn_ref[...]              # (6, 1) precomputed 1/gn
    row = lax.broadcasted_iota(jnp.int32, d.shape, 0)
    # scale_boxes: shape1 == shape0 here (gain 1, pad 0) -> pure clip of the box rows.
    clipped = jnp.where(row < 4, jnp.clip(d, 0.0, gn), d)
    x1, y1, x2, y2 = clipped[0:1], clipped[1:2], clipped[2:3], clipped[3:4]
    cc = clipped[4:6]
    xywh = jnp.concatenate(
        [(x1 + x2) * 0.5, (y1 + y2) * 0.5, x2 - x1, y2 - y1, cc], axis=0)
    xyxy_ref[...] = clipped
    xywh_ref[...] = xywh
    xyxyn_ref[...] = clipped * inv_gn
    xywhn_ref[...] = xywh * inv_gn


def run_detections(d_flat, gn, inv_gn):
    shp = jax.ShapeDtypeStruct(d_flat.shape, jnp.float32)
    return pl.pallas_call(_detections_kernel,
                          out_shape=(shp, shp, shp, shp))(d_flat, gn, inv_gn)


# --------------------------------------------------------------------------------------
# AutoShape.forward equivalent.
# --------------------------------------------------------------------------------------
def autoshape_forward(ims_nchw, w1, b1, w2, b2):
    B, C, H, W = ims_nchw.shape
    HW = H * W

    # dt[0] preprocessing: NCHW -> SoA (B, C, HW); /255 folded into w1; bf16 activations.
    # TODO(synk): PIL/cv2 decode, EXIF transpose and LetterBox resize have no Pallas
    # equivalent; inputs are assumed already at the network (letterboxed) shape.
    x_soa = ims_nchw.reshape(B, C, HW).astype(jnp.bfloat16)
    w1t = (w1 * (1.0 / 255.0)).T.astype(jnp.bfloat16)                # (HIDDEN, C)
    b1t = b1.reshape(HIDDEN, 1).astype(jnp.float32)
    w2t = w2.T.astype(jnp.bfloat16)                                  # (NO, HIDDEN)
    b2t = b2.reshape(NO, 1).astype(jnp.float32)

    # HW tiling: lane-dense tiles (<= 4096 lanes), HW padded to a multiple of tile_hw and
    # tail lanes masked in-kernel.  If B == 1, keep >= 2 HW tiles so v7x's two TCs split.
    tile_hw = min(4096, _round_up(HW, 128))
    if B == 1:
        tile_hw = min(tile_hw, max(128, _round_up((HW + 1) // 2, 128)))
    hw_pad = _round_up(HW, tile_hw)
    if hw_pad != HW:
        x_soa = jnp.pad(x_soa, ((0, 0), (0, 0), (0, hw_pad - HW)))

    # dt[1] inference + fused decode: (B, 6, hw_pad) = [x1, y1, x2, y2, conf, cls].
    dec = run_model(x_soa, w1t, b1t, w2t, b2t, W, tile_hw, HW)

    # dt[2] NMS.  multi_label=False semantics: conf = max_c(obj*cls_c) thresholded.
    boxes_soa = dec[:, 0:4, :]                                       # (B, 4, hw_pad)
    conf = dec[:, 4, :]                                              # (B, hw_pad)
    cls_idx = dec[:, 5, :]                                           # (B, hw_pad)

    # Candidate pre-filter (upstream max_nms): top-K by conf before the O(K^2) stage.
    K = min(hw_pad, MAX_NMS)                                         # multiple of 128
    score = jnp.where(conf > CONF_THRES, conf, -1.0)
    top_scores, top_idx = lax.top_k(score, K)                        # sorted descending
    cand = (top_scores > 0.0).astype(jnp.float32)[:, None, :]        # (B, 1, K)
    sel_conf = jnp.take_along_axis(conf, top_idx, axis=1)            # (B, K)
    sel_cls = jnp.take_along_axis(cls_idx, top_idx, axis=1)          # (B, K)
    sel_boxes = jnp.take_along_axis(boxes_soa, top_idx[:, None, :], axis=2)  # (B, 4, K)

    # Class offset (agnostic=False); NOTE: assumes image coords < MAX_WH.
    offset = 0.0 if AGNOSTIC else MAX_WH
    boxes_off_soa = sel_boxes + (sel_cls * offset)[:, None, :]       # (B, 4, K)
    boxes_off_aos = jnp.transpose(boxes_off_soa, (0, 2, 1))          # (B, K, 4)

    keep = run_nms(boxes_off_aos, boxes_off_soa, cand)[:, 0, :]      # (B, K) 0/1

    final_score = jnp.where(keep > 0.0, sel_conf, -1.0)
    top_fin, fidx = lax.top_k(final_score, MAX_DET)                  # (B, MAX_DET)
    det_boxes = jnp.take_along_axis(sel_boxes, fidx[:, None, :], axis=2)   # (B, 4, MD)
    det_conf = jnp.take_along_axis(sel_conf, fidx, axis=1)
    det_cls = jnp.take_along_axis(sel_cls, fidx, axis=1)
    valid = top_fin > 0.0
    dets_soa = jnp.concatenate(
        [det_boxes, det_conf[:, None, :], det_cls[:, None, :]], axis=1)    # (B, 6, MD)
    dets_soa = jnp.where(valid[:, None, :], dets_soa, 0.0)

    # Detections(): gn = [w, h, w, h, 1, 1]; lane axis padded to a multiple of 128.
    gn = jnp.array([[float(W)], [float(H)], [float(W)], [float(H)], [1.0], [1.0]],
                   jnp.float32)
    inv_gn = 1.0 / gn
    M = B * MAX_DET
    Mp = _round_up(M, 128)
    d_flat = jnp.transpose(dets_soa, (1, 0, 2)).reshape(6, M)
    if Mp != M:
        d_flat = jnp.pad(d_flat, ((0, 0), (0, Mp - M)))
    xyxy_f, xywh_f, xyxyn_f, xywhn_f = run_detections(d_flat, gn, inv_gn)

    def to_bmd6(a):                       # (6, Mp) SoA -> (B, MAX_DET, 6)
        return jnp.transpose(a[:, :M].reshape(6, B, MAX_DET), (1, 2, 0))

    xyxy = to_bmd6(xyxy_f)
    return {"xyxy": xyxy, "xywh": to_bmd6(xywh_f),
            "xyxyn": to_bmd6(xyxyn_f), "xywhn": to_bmd6(xywhn_f),
            "pred": xyxy,                 # self.pred aliases the clipped xyxy upstream
            "shape": (B, C, H, W)}


if __name__ == "__main__":
    B, C, H, W = 2, 3, 16, 16
    key = jax.random.PRNGKey(0)
    k_im, k_w1, k_b1, k_w2, k_b2 = jax.random.split(key, 5)
    # Deterministic synthetic "images" in [0, 255] and head weights.
    ims_nchw = jax.random.uniform(k_im, (B, C, H, W), jnp.float32, 0.0, 255.0)
    w1 = jax.random.normal(k_w1, (C, HIDDEN), jnp.float32) * 0.5
    b1 = jax.random.normal(k_b1, (1, HIDDEN), jnp.float32) * 0.1
    w2 = jax.random.normal(k_w2, (HIDDEN, NO), jnp.float32) * 0.3
    b2 = jax.random.normal(k_b2, (1, NO), jnp.float32) * 0.1

    out = jax.jit(autoshape_forward)(ims_nchw, w1, b1, w2, b2)
    jax.block_until_ready(out)
    assert out["xyxy"].shape == (B, MAX_DET, 6)
    assert out["xywhn"].shape == (B, MAX_DET, 6)
    print("KERNEL_OK")
</pallas_src>

<mosaic_0001>
module attributes {stable_mosaic.version = 11 : i64} {
  func.func @_model_kernel(%arg0: i32, %arg1: i32, %arg2: memref<1x3x256xbf16, #tpu.memory_space<vmem>>, %arg3: memref<32x3xbf16, #tpu.memory_space<vmem>>, %arg4: memref<32x1xf32, #tpu.memory_space<vmem>>, %arg5: memref<8x32xbf16, #tpu.memory_space<vmem>>, %arg6: memref<8x1xf32, #tpu.memory_space<vmem>>, %arg7: memref<1x6x256xf32, #tpu.memory_space<vmem>>) attributes {dimension_semantics = [#tpu.dimension_semantics<parallel>, #tpu.dimension_semantics<parallel>], iteration_bounds = array<i64: 2, 1>, scalar_prefetch = 0 : i64, scratch_operands = 0 : i64, tpu.core_type = #tpu.core_type<tc>, window_params = [{transform_indices = @transform_0, window_bounds = array<i64: 1, 3, 256>}, {pipeline_mode = #tpu.pipeline_mode<synchronous>, transform_indices = @transform_1, window_bounds = array<i64: 32, 3>}, {pipeline_mode = #tpu.pipeline_mode<synchronous>, transform_indices = @transform_2, window_bounds = array<i64: 32, 1>}, {pipeline_mode = #tpu.pipeline_mode<synchronous>, transform_indices = @transform_3, window_bounds = array<i64: 8, 32>}, {pipeline_mode = #tpu.pipeline_mode<synchronous>, transform_indices = @transform_4, window_bounds = array<i64: 8, 1>}, {transform_indices = @transform_5, window_bounds = array<i64: 1, 6, 256>}]} {
    %c0 = arith.constant 0 : index
    %c0_0 = arith.constant 0 : index
    %c0_1 = arith.constant 0 : index
    %0 = vector.load %arg2[%c0, %c0_0, %c0_1] : memref<1x3x256xbf16, #tpu.memory_space<vmem>>, vector<1x3x256xbf16>
    %1 = vector.shape_cast %0 : vector<1x3x256xbf16> to vector<3x256xbf16>
    %c0_2 = arith.constant 0 : index
    %c0_3 = arith.constant 0 : index
    %2 = vector.load %arg3[%c0_2, %c0_3] : memref<32x3xbf16, #tpu.memory_space<vmem>>, vector<32x3xbf16>
    %cst = arith.constant dense<0.000000e+00> : vector<32x256xf32>
    %3 = tpu.matmul %2, %1, %cst {dimension_numbers = #tpu.dot_dimension_numbers<[1], [0], [0], [1], [0, 0, 1, 1], [], []>} : vector<32x3xbf16>, vector<3x256xbf16>, vector<32x256xf32> -> vector<32x256xf32>
    %c0_4 = arith.constant 0 : index
    %c0_5 = arith.constant 0 : index
    %4 = vector.load %arg4[%c0_4, %c0_5] : memref<32x1xf32, #tpu.memory_space<vmem>>, vector<32x1xf32>
    %5 = vector.broadcast %4 : vector<32x1xf32> to vector<32x256xf32>
    %6 = arith.addf %3, %5 : vector<32x256xf32>
    %cst_6 = arith.constant 0.000000e+00 : f32
    %7 = vector.broadcast %cst_6 : f32 to vector<32x256xf32>
    %8 = arith.maximumf %6, %7 : vector<32x256xf32>
    %c0_7 = arith.constant 0 : index
    %c0_8 = arith.constant 0 : index
    %9 = vector.load %arg5[%c0_7, %c0_8] : memref<8x32xbf16, #tpu.memory_space<vmem>>, vector<8x32xbf16>
    %10 = arith.truncf %8 : vector<32x256xf32> to vector<32x256xbf16>
    %cst_9 = arith.constant dense<0.000000e+00> : vector<8x256xf32>
    %11 = tpu.matmul %9, %10, %cst_9 {dimension_numbers = #tpu.dot_dimension_numbers<[1], [0], [0], [1], [0, 0, 1, 1], [], []>} : vector<8x32xbf16>, vector<32x256xbf16>, vector<8x256xf32> -> vector<8x256xf32>
    %c0_10 = arith.constant 0 : index
    %c0_11 = arith.constant 0 : index
    %12 = vector.load %arg6[%c0_10, %c0_11] : memref<8x1xf32, #tpu.memory_space<vmem>>, vector<8x1xf32>
    %13 = vector.broadcast %12 : vector<8x1xf32> to vector<8x256xf32>
    %14 = arith.addf %11, %13 : vector<8x256xf32>
    %15 = arith.negf %14 : vector<8x256xf32>
    %16 = math.exp %15 : vector<8x256xf32>
    %cst_12 = arith.constant 1.000000e+00 : f32
    %17 = vector.broadcast %cst_12 : f32 to vector<8x256xf32>
    %18 = arith.addf %17, %16 : vector<8x256xf32>
    %19 = arith.divf %17, %18 : vector<8x256xf32>
    %20 = tpu.iota {dimensions = array<i32: 1>} : vector<1x256xi32>
    %c256_i32 = arith.constant 256 : i32
    %21 = arith.muli %arg1, %c256_i32 : i32
    %22 = vector.broadcast %21 : i32 to vector<1x256xi32>
    %23 = arith.addi %20, %22 : vector<1x256xi32>
    %c15_i32 = arith.constant 15 : i32
    %24 = vector.broadcast %c15_i32 : i32 to vector<1x256xi32>
    %25 = arith.andi %23, %24 : vector<1x256xi32>
    %26 = arith.sitofp %25 : vector<1x256xi32> to vector<1x256xf32>
    %c4_i32 = arith.constant 4 : i32
    %27 = vector.broadcast %c4_i32 : i32 to vector<1x256xi32>
    %28 = arith.shrsi %23, %27 : vector<1x256xi32>
    %29 = arith.sitofp %28 : vector<1x256xi32> to vector<1x256xf32>
    %30 = vector.extract_strided_slice %19 {offsets = [0, 0], sizes = [1, 256], strides = [1, 1]} : vector<8x256xf32> to vector<1x256xf32>
    %cst_13 = arith.constant 2.000000e+00 : f32
    %31 = vector.broadcast %cst_13 : f32 to vector<1x256xf32>
    %32 = arith.mulf %30, %31 : vector<1x256xf32>
    %cst_14 = arith.constant 5.000000e-01 : f32
    %33 = vector.broadcast %cst_14 : f32 to vector<1x256xf32>
    %34 = arith.subf %32, %33 : vector<1x256xf32>
    %35 = arith.addf %34, %26 : vector<1x256xf32>
    %cst_15 = arith.constant 1.000000e+00 : f32
    %36 = vector.broadcast %cst_15 : f32 to vector<1x256xf32>
    %37 = arith.mulf %35, %36 : vector<1x256xf32>
    %38 = vector.extract_strided_slice %19 {offsets = [1, 0], sizes = [1, 256], strides = [1, 1]} : vector<8x256xf32> to vector<1x256xf32>
    %cst_16 = arith.constant 2.000000e+00 : f32
    %39 = vector.broadcast %cst_16 : f32 to vector<1x256xf32>
    %40 = arith.mulf %38, %39 : vector<1x256xf32>
    %cst_17 = arith.constant 5.000000e-01 : f32
    %41 = vector.broadcast %cst_17 : f32 to vector<1x256xf32>
    %42 = arith.subf %40, %41 : vector<1x256xf32>
    %43 = arith.addf %42, %29 : vector<1x256xf32>
    %cst_18 = arith.constant 1.000000e+00 : f32
    %44 = vector.broadcast %cst_18 : f32 to vector<1x256xf32>
    %45 = arith.mulf %43, %44 : vector<1x256xf32>
    %46 = vector.extract_strided_slice %19 {offsets = [2, 0], sizes = [1, 256], strides = [1, 1]} : vector<8x256xf32> to vector<1x256xf32>
    %cst_19 = arith.constant 2.000000e+00 : f32
    %47 = vector.broadcast %cst_19 : f32 to vector<1x256xf32>
    %48 = arith.mulf %46, %47 : vector<1x256xf32>
    %49 = arith.mulf %48, %48 : vector<1x256xf32>
    %cst_20 = arith.constant 4.000000e+00 : f32
    %50 = vector.broadcast %cst_20 : f32 to vector<1x256xf32>
    %51 = arith.mulf %49, %50 : vector<1x256xf32>
    %52 = vector.extract_strided_slice %19 {offsets = [3, 0], sizes = [1, 256], strides = [1, 1]} : vector<8x256xf32> to vector<1x256xf32>
    %cst_21 = arith.constant 2.000000e+00 : f32
    %53 = vector.broadcast %cst_21 : f32 to vector<1x256xf32>
    %54 = arith.mulf %52, %53 : vector<1x256xf32>
    %55 = arith.mulf %54, %54 : vector<1x256xf32>
    %cst_22 = arith.constant 4.000000e+00 : f32
    %56 = vector.broadcast %cst_22 : f32 to vector<1x256xf32>
    %57 = arith.mulf %55, %56 : vector<1x256xf32>
    %58 = vector.extract_strided_slice %19 {offsets = [4, 0], sizes = [1, 256], strides = [1, 1]} : vector<8x256xf32> to vector<1x256xf32>
    %cst_23 = arith.constant 0.000000e+00 : f32
    %59 = vector.broadcast %cst_23 : f32 to vector<1x256xf32>
    %cst_24 = arith.constant 0.000000e+00 : f32
    %60 = vector.broadcast %cst_24 : f32 to vector<1x256xf32>
    %61 = vector.extract_strided_slice %19 {offsets = [5, 0], sizes = [1, 256], strides = [1, 1]} : vector<8x256xf32> to vector<1x256xf32>
    %62 = arith.mulf %61, %58 : vector<1x256xf32>
    %63 = arith.cmpf ogt, %62, %59 : vector<1x256xf32>
    %cst_25 = arith.constant 0.000000e+00 : f32
    %64 = vector.broadcast %cst_25 : f32 to vector<1x256xf32>
    %65 = arith.select %63, %64, %60 : vector<1x256xi1>, vector<1x256xf32>
    %66 = arith.select %63, %62, %59 : vector<1x256xi1>, vector<1x256xf32>
    %67 = vector.extract_strided_slice %19 {offsets = [6, 0], sizes = [1, 256], strides = [1, 1]} : vector<8x256xf32> to vector<1x256xf32>
    %68 = arith.mulf %67, %58 : vector<1x256xf32>
    %69 = arith.cmpf ogt, %68, %66 : vector<1x256xf32>
    %cst_26 = arith.constant 1.000000e+00 : f32
    %70 = vector.broadcast %cst_26 : f32 to vector<1x256xf32>
    %71 = arith.select %69, %70, %65 : vector<1x256xi1>, vector<1x256xf32>
    %72 = arith.select %69, %68, %66 : vector<1x256xi1>, vector<1x256xf32>
    %73 = vector.extract_strided_slice %19 {offsets = [7, 0], sizes = [1, 256], strides = [1, 1]} : vector<8x256xf32> to vector<1x256xf32>
    %74 = arith.mulf %73, %58 : vector<1x256xf32>
    %75 = arith.cmpf ogt, %74, %72 : vector<1x256xf32>
    %cst_27 = arith.constant 2.000000e+00 : f32
    %76 = vector.broadcast %cst_27 : f32 to vector<1x256xf32>
    %77 = arith.select %75, %76, %71 : vector<1x256xi1>, vector<1x256xf32>
    %78 = arith.select %75, %74, %72 : vector<1x256xi1>, vector<1x256xf32>
    %c256_i32_28 = arith.constant 256 : i32
    %79 = vector.broadcast %c256_i32_28 : i32 to vector<1x256xi32>
    %80 = arith.cmpi slt, %23, %79 : vector<1x256xi32>
    %cst_29 = arith.constant 0.000000e+00 : f32
    %81 = vector.broadcast %cst_29 : f32 to vector<1x256xf32>
    %82 = arith.select %80, %78, %81 : vector<1x256xi1>, vector<1x256xf32>
    %cst_30 = arith.constant 5.000000e-01 : f32
    %83 = vector.broadcast %cst_30 : f32 to vector<1x256xf32>
    %84 = arith.mulf %51, %83 : vector<1x256xf32>
    %cst_31 = arith.constant 5.000000e-01 : f32
    %85 = vector.broadcast %cst_31 : f32 to vector<1x256xf32>
    %86 = arith.mulf %57, %85 : vector<1x256xf32>
    %87 = arith.subf %37, %84 : vector<1x256xf32>
    %88 = arith.subf %45, %86 : vector<1x256xf32>
    %89 = arith.addf %37, %84 : vector<1x256xf32>
    %90 = arith.addf %45, %86 : vector<1x256xf32>
    %91 = tpu.concatenate %87, %88, %89, %90, %82, %77 in 0 : vector<1x256xf32>, vector<1x256xf32>, vector<1x256xf32>, vector<1x256xf32>, vector<1x256xf32>, vector<1x256xf32> -> vector<6x256xf32>
    %c0_32 = arith.constant 0 : index
    %c0_33 = arith.constant 0 : index
    %c0_34 = arith.constant 0 : index
    %92 = vector.load %arg7[%c0_32, %c0_33, %c0_34] : memref<1x6x256xf32, #tpu.memory_space<vmem>>, vector<1x6x256xf32>
    %93 = vector.shape_cast %92 : vector<1x6x256xf32> to vector<6x256xf32>
    %94 = vector.shape_cast %91 : vector<6x256xf32> to vector<1x6x256xf32>
    tpu.vector_store %arg7[%c0_32, %c0_33, %c0_34], %94 {strides = array<i32>} : memref<1x6x256xf32, #tpu.memory_space<vmem>>, vector<1x6x256xf32>,
    return
  }
  func.func @transform_0(%arg0: i32, %arg1: i32) -> (i32, i32, i32) {
    %c0_i32 = arith.constant 0 : i32
    %c0_i32_0 = arith.constant 0 : i32
    return %arg0, %c0_i32, %arg1 : i32, i32, i32
  }
  func.func @transform_1(%arg0: i32, %arg1: i32) -> (i32, i32) {
    %c0_i32 = arith.constant 0 : i32
    %c0_i32_0 = arith.constant 0 : i32
    %c0_i32_1 = arith.constant 0 : i32
    return %c0_i32, %c0_i32_0 : i32, i32
  }
  func.func @transform_2(%arg0: i32, %arg1: i32) -> (i32, i32) {
    %c0_i32 = arith.constant 0 : i32
    %c0_i32_0 = arith.constant 0 : i32
    %c0_i32_1 = arith.constant 0 : i32
    return %c0_i32, %c0_i32_0 : i32, i32
  }
  func.func @transform_3(%arg0: i32, %arg1: i32) -> (i32, i32) {
    %c0_i32 = arith.constant 0 : i32
    %c0_i32_0 = arith.constant 0 : i32
    %c0_i32_1 = arith.constant 0 : i32
    return %c0_i32, %c0_i32_0 : i32, i32
  }
  func.func @transform_4(%arg0: i32, %arg1: i32) -> (i32, i32) {
    %c0_i32 = arith.constant 0 : i32
    %c0_i32_0 = arith.constant 0 : i32
    %c0_i32_1 = arith.constant 0 : i32
    return %c0_i32, %c0_i32_0 : i32, i32
  }
  func.func @transform_5(%arg0: i32, %arg1: i32) -> (i32, i32, i32) {
    %c0_i32 = arith.constant 0 : i32
    %c0_i32_0 = arith.constant 0 : i32
    return %arg0, %c0_i32, %arg1 : i32, i32, i32
  }
}

module attributes {stable_mosaic.version = 11 : i64} {
  func.func @_nms_kernel(%arg0: i32, %arg1: memref<1x128x4xf32, #tpu.memory_space<vmem>>, %arg2: memref<1x4x128xf32, #tpu.memory_space<vmem>>, %arg3: memref<1x1x128xf32, #tpu.memory_space<vmem>>, %arg4: memref<1x1x128xf32, #tpu.memory_space<vmem>>, %arg5: memref<128x128xf32, #tpu.memory_space<vmem>>) attributes {dimension_semantics = [#tpu.dimension_semantics<parallel>], iteration_bounds = array<i64: 2>, scalar_prefetch = 0 : i64, scratch_operands = 1 : i64, tpu.core_type = #tpu.core_type<tc>, window_params = [{transform_indices = @transform_0, window_bounds = array<i64: 1, 128, 4>}, {transform_indices = @transform_1, window_bounds = array<i64: 1, 4, 128>}, {transform_indices = @transform_2, window_bounds = array<i64: 1, 1, 128>}, {transform_indices = @transform_3, window_bounds = array<i64: 1, 1, 128>}]} {
    %c0 = arith.constant 0 : index
    %c0_0 = arith.constant 0 : index
    %c0_1 = arith.constant 0 : index
    %0 = vector.load %arg1[%c0, %c0_0, %c0_1] : memref<1x128x4xf32, #tpu.memory_space<vmem>>, vector<1x128x4xf32>
    %1 = vector.shape_cast %0 : vector<1x128x4xf32> to vector<128x4xf32>
    %c0_2 = arith.constant 0 : index
    %c0_3 = arith.constant 0 : index
    %c0_4 = arith.constant 0 : index
    %2 = vector.load %arg2[%c0_2, %c0_3, %c0_4] : memref<1x4x128xf32, #tpu.memory_space<vmem>>, vector<1x4x128xf32>
    %3 = vector.shape_cast %2 : vector<1x4x128xf32> to vector<4x128xf32>
    %4 = vector.extract_strided_slice %1 {offsets = [0, 0], sizes = [128, 1], strides = [1, 1]} : vector<128x4xf32> to vector<128x1xf32>
    %5 = vector.extract_strided_slice %1 {offsets = [0, 1], sizes = [128, 1], strides = [1, 1]} : vector<128x4xf32> to vector<128x1xf32>
    %6 = vector.extract_strided_slice %1 {offsets = [0, 2], sizes = [128, 1], strides = [1, 1]} : vector<128x4xf32> to vector<128x1xf32>
    %7 = vector.extract_strided_slice %1 {offsets = [0, 3], sizes = [128, 1], strides = [1, 1]} : vector<128x4xf32> to vector<128x1xf32>
    %8 = vector.extract_strided_slice %3 {offsets = [0, 0], sizes = [1, 128], strides = [1, 1]} : vector<4x128xf32> to vector<1x128xf32>
    %9 = vector.extract_strided_slice %3 {offsets = [1, 0], sizes = [1, 128], strides = [1, 1]} : vector<4x128xf32> to vector<1x128xf32>
    %10 = vector.extract_strided_slice %3 {offsets = [2, 0], sizes = [1, 128], strides = [1, 1]} : vector<4x128xf32> to vector<1x128xf32>
    %11 = vector.extract_strided_slice %3 {offsets = [3, 0], sizes = [1, 128], strides = [1, 1]} : vector<4x128xf32> to vector<1x128xf32>
    %12 = arith.subf %6, %4 : vector<128x1xf32>
    %13 = arith.subf %7, %5 : vector<128x1xf32>
    %14 = arith.mulf %12, %13 : vector<128x1xf32>
    %15 = arith.subf %10, %8 : vector<1x128xf32>
    %16 = arith.subf %11, %9 : vector<1x128xf32>
    %17 = arith.mulf %15, %16 : vector<1x128xf32>
    %18 = vector.broadcast %6 : vector<128x1xf32> to vector<128x128xf32>
    %19 = vector.broadcast %10 : vector<1x128xf32> to vector<128x128xf32>
    %20 = arith.minimumf %18, %19 : vector<128x128xf32>
    %21 = vector.broadcast %4 : vector<128x1xf32> to vector<128x128xf32>
    %22 = vector.broadcast %8 : vector<1x128xf32> to vector<128x128xf32>
    %23 = arith.maximumf %21, %22 : vector<128x128xf32>
    %24 = arith.subf %20, %23 : vector<128x128xf32>
    %cst = arith.constant 0.000000e+00 : f32
    %25 = vector.broadcast %cst : f32 to vector<128x128xf32>
    %26 = arith.maximumf %24, %25 : vector<128x128xf32>
    %27 = vector.broadcast %7 : vector<128x1xf32> to vector<128x128xf32>
    %28 = vector.broadcast %11 : vector<1x128xf32> to vector<128x128xf32>
    %29 = arith.minimumf %27, %28 : vector<128x128xf32>
    %30 = vector.broadcast %5 : vector<128x1xf32> to vector<128x128xf32>
    %31 = vector.broadcast %9 : vector<1x128xf32> to vector<128x128xf32>
    %32 = arith.maximumf %30, %31 : vector<128x128xf32>
    %33 = arith.subf %29, %32 : vector<128x128xf32>
    %cst_5 = arith.constant 0.000000e+00 : f32
    %34 = vector.broadcast %cst_5 : f32 to vector<128x128xf32>
    %35 = arith.maximumf %33, %34 : vector<128x128xf32>
    %36 = arith.mulf %26, %35 : vector<128x128xf32>
    %37 = vector.broadcast %14 : vector<128x1xf32> to vector<128x128xf32>
    %38 = vector.broadcast %17 : vector<1x128xf32> to vector<128x128xf32>
    %39 = arith.addf %37, %38 : vector<128x128xf32>
    %40 = arith.subf %39, %36 : vector<128x128xf32>
    %cst_6 = arith.constant 1.000000e-07 : f32
    %41 = vector.broadcast %cst_6 : f32 to vector<128x128xf32>
    %42 = arith.addf %40, %41 : vector<128x128xf32>
    %cst_7 = arith.constant 4.500000e-01 : f32
    %43 = vector.broadcast %cst_7 : f32 to vector<128x128xf32>
    %44 = arith.mulf %43, %42 : vector<128x128xf32>
    %45 = arith.cmpf ogt, %36, %44 : vector<128x128xf32>
    %46 = arith.extui %45 : vector<128x128xi1> to vector<128x128xi32>
    %47 = arith.sitofp %46 : vector<128x128xi32> to vector<128x128xf32>
    %c0_8 = arith.constant 0 : index
    %c0_9 = arith.constant 0 : index
    %48 = vector.load %arg5[%c0_8, %c0_9] : memref<128x128xf32, #tpu.memory_space<vmem>>, vector<128x128xf32>
    tpu.vector_store %arg5[%c0_8, %c0_9], %47 {strides = array<i32>} : memref<128x128xf32, #tpu.memory_space<vmem>>, vector<128x128xf32>,
    %c0_10 = arith.constant 0 : index
    %c0_11 = arith.constant 0 : index
    %c0_12 = arith.constant 0 : index
    %49 = vector.load %arg3[%c0_10, %c0_11, %c0_12] : memref<1x1x128xf32, #tpu.memory_space<vmem>>, vector<1x1x128xf32>
    %50 = vector.shape_cast %49 : vector<1x1x128xf32> to vector<1x128xf32>
    %51 = tpu.iota {dimensions = array<i32: 1>} : vector<1x128xi32>
    %c0_i32 = arith.constant 0 : i32
    %c128_i32 = arith.constant 128 : i32
    %52 = arith.addi %c0_i32, %c128_i32 : i32
    %c1_i32 = arith.constant 1 : i32
    %53 = scf.for %arg6 = %c0_i32 to %52 step %c1_i32 iter_args(%arg7 = %50) -> (vector<1x128xf32>)  : i32 {
      %57 = arith.index_cast %arg6 : i32 to index
      %c0_17 = arith.constant 0 : index
      %58 = vector.load %arg5[%57, %c0_17] : memref<128x128xf32, #tpu.memory_space<vmem>>, vector<1x128xf32>
      %59 = vector.broadcast %arg6 : i32 to vector<1x128xi32>
      %60 = arith.cmpi slt, %51, %59 : vector<1x128xi32>
      %61 = arith.mulf %arg7, %58 : vector<1x128xf32>
      %cst_18 = arith.constant 0.000000e+00 : f32
      %62 = vector.broadcast %cst_18 : f32 to vector<1x128xf32>
      %63 = arith.select %60, %61, %62 : vector<1x128xi1>, vector<1x128xf32>
      %64 = vector.shape_cast %63 : vector<1x128xf32> to vector<1x1x128xf32>
      %cst_19 = arith.constant dense<0.000000e+00> : vector<1xf32>
      %65 = vector.multi_reduction <add>, %64, %cst_19 [1, 2] : vector<1x1x128xf32> to vector<1xf32>
      %66 = vector.shape_cast %65 : vector<1xf32> to vector<1x1x1xf32>
      %67 = vector.extract %66[0, 0, 0] : f32 from vector<1x1x1xf32>
      %cst_20 = arith.constant 0.000000e+00 : f32
      %68 = arith.cmpf ogt, %67, %cst_20 : f32
      %69 = vector.broadcast %arg6 : i32 to vector<1x128xi32>
      %70 = arith.cmpi eq, %51, %69 : vector<1x128xi32>
      %cst_21 = arith.constant 0.000000e+00 : f32
      %71 = vector.broadcast %cst_21 : f32 to vector<1x128xf32>
      %72 = arith.select %68, %71, %arg7 : vector<1x128xf32>
      %73 = arith.select %70, %72, %arg7 : vector<1x128xi1>, vector<1x128xf32>
      scf.yield %73 : vector<1x128xf32>
    }
    %c128_i32_13 = arith.constant 128 : i32
    %c0_14 = arith.constant 0 : index
    %c0_15 = arith.constant 0 : index
    %c0_16 = arith.constant 0 : index
    %54 = vector.load %arg4[%c0_14, %c0_15, %c0_16] : memref<1x1x128xf32, #tpu.memory_space<vmem>>, vector<1x1x128xf32>
    %55 = vector.shape_cast %54 : vector<1x1x128xf32> to vector<1x128xf32>
    %56 = vector.shape_cast %53 : vector<1x128xf32> to vector<1x1x128xf32>
    tpu.vector_store %arg4[%c0_14, %c0_15, %c0_16], %56 {strides = array<i32>} : memref<1x1x128xf32, #tpu.memory_space<vmem>>, vector<1x1x128xf32>,
    return
  }
  func.func @transform_0(%arg0: i32) -> (i32, i32, i32) {
    %c0_i32 = arith.constant 0 : i32
    %c0_i32_0 = arith.constant 0 : i32
    %c0_i32_1 = arith.constant 0 : i32
    return %arg0, %c0_i32, %c0_i32_0 : i32, i32, i32
  }
  func.func @transform_1(%arg0: i32) -> (i32, i32, i32) {
    %c0_i32 = arith.constant 0 : i32
    %c0_i32_0 = arith.constant 0 : i32
    %c0_i32_1 = arith.constant 0 : i32
    return %arg0, %c0_i32, %c0_i32_0 : i32, i32, i32
  }
  func.func @transform_2(%arg0: i32) -> (i32, i32, i32) {
    %c0_i32 = arith.constant 0 : i32
    %c0_i32_0 = arith.constant 0 : i32
    %c0_i32_1 = arith.constant 0 : i32
    return %arg0, %c0_i32, %c0_i32_0 : i32, i32, i32
  }
  func.func @transform_3(%arg0: i32) -> (i32, i32, i32) {
    %c0_i32 = arith.constant 0 : i32
    %c0_i32_0 = arith.constant 0 : i32
    %c0_i32_1 = arith.constant 0 : i32
    return %arg0, %c0_i32, %c0_i32_0 : i32, i32, i32
  }
}

module attributes {stable_mosaic.version = 11 : i64} {
  func.func @_detections_kernel(%arg0: memref<6x128xf32, #tpu.memory_space<vmem>>, %arg1: memref<6x1xf32, #tpu.memory_space<vmem>>, %arg2: memref<6x1xf32, #tpu.memory_space<vmem>>, %arg3: memref<6x128xf32, #tpu.memory_space<vmem>>, %arg4: memref<6x128xf32, #tpu.memory_space<vmem>>, %arg5: memref<6x128xf32, #tpu.memory_space<vmem>>, %arg6: memref<6x128xf32, #tpu.memory_space<vmem>>) attributes {dimension_semantics = [], scalar_prefetch = 0 : i64, scratch_operands = 0 : i64, tpu.core_type = #tpu.core_type<tc>} {
    %c0 = arith.constant 0 : index
    %c0_0 = arith.constant 0 : index
    %0 = vector.load %arg0[%c0, %c0_0] : memref<6x128xf32, #tpu.memory_space<vmem>>, vector<6x128xf32>
    %c0_1 = arith.constant 0 : index
    %c0_2 = arith.constant 0 : index
    %1 = vector.load %arg1[%c0_1, %c0_2] : memref<6x1xf32, #tpu.memory_space<vmem>>, vector<6x1xf32>
    %c0_3 = arith.constant 0 : index
    %c0_4 = arith.constant 0 : index
    %2 = vector.load %arg2[%c0_3, %c0_4] : memref<6x1xf32, #tpu.memory_space<vmem>>, vector<6x1xf32>
    %3 = tpu.iota {dimensions = array<i32: 0>} : vector<6x128xi32>
    %c4_i32 = arith.constant 4 : i32
    %4 = vector.broadcast %c4_i32 : i32 to vector<6x128xi32>
    %5 = arith.cmpi slt, %3, %4 : vector<6x128xi32>
    %cst = arith.constant 0.000000e+00 : f32
    %6 = vector.broadcast %cst : f32 to vector<6x128xf32>
    %7 = arith.maximumf %6, %0 : vector<6x128xf32>
    %8 = vector.broadcast %1 : vector<6x1xf32> to vector<6x128xf32>
    %9 = arith.minimumf %8, %7 : vector<6x128xf32>
    %10 = arith.select %5, %9, %0 : vector<6x128xi1>, vector<6x128xf32>
    %11 = vector.extract_strided_slice %10 {offsets = [0, 0], sizes = [1, 128], strides = [1, 1]} : vector<6x128xf32> to vector<1x128xf32>
    %12 = vector.extract_strided_slice %10 {offsets = [1, 0], sizes = [1, 128], strides = [1, 1]} : vector<6x128xf32> to vector<1x128xf32>
    %13 = vector.extract_strided_slice %10 {offsets = [2, 0], sizes = [1, 128], strides = [1, 1]} : vector<6x128xf32> to vector<1x128xf32>
    %14 = vector.extract_strided_slice %10 {offsets = [3, 0], sizes = [1, 128], strides = [1, 1]} : vector<6x128xf32> to vector<1x128xf32>
    %15 = vector.extract_strided_slice %10 {offsets = [4, 0], sizes = [2, 128], strides = [1, 1]} : vector<6x128xf32> to vector<2x128xf32>
    %16 = arith.addf %11, %13 : vector<1x128xf32>
    %cst_5 = arith.constant 5.000000e-01 : f32
    %17 = vector.broadcast %cst_5 : f32 to vector<1x128xf32>
    %18 = arith.mulf %16, %17 : vector<1x128xf32>
    %19 = arith.addf %12, %14 : vector<1x128xf32>
    %cst_6 = arith.constant 5.000000e-01 : f32
    %20 = vector.broadcast %cst_6 : f32 to vector<1x128xf32>
    %21 = arith.mulf %19, %20 : vector<1x128xf32>
    %22 = arith.subf %13, %11 : vector<1x128xf32>
    %23 = arith.subf %14, %12 : vector<1x128xf32>
    %24 = tpu.concatenate %18, %21, %22, %23, %15 in 0 : vector<1x128xf32>, vector<1x128xf32>, vector<1x128xf32>, vector<1x128xf32>, vector<2x128xf32> -> vector<6x128xf32>
    %c0_7 = arith.constant 0 : index
    %c0_8 = arith.constant 0 : index
    %25 = vector.load %arg3[%c0_7, %c0_8] : memref<6x128xf32, #tpu.memory_space<vmem>>, vector<6x128xf32>
    tpu.vector_store %arg3[%c0_7, %c0_8], %10 {strides = array<i32>} : memref<6x128xf32, #tpu.memory_space<vmem>>, vector<6x128xf32>,
    %c0_9 = arith.constant 0 : index
    %c0_10 = arith.constant 0 : index
    %26 = vector.load %arg4[%c0_9, %c0_10] : memref<6x128xf32, #tpu.memory_space<vmem>>, vector<6x128xf32>
    tpu.vector_store %arg4[%c0_9, %c0_10], %24 {strides = array<i32>} : memref<6x128xf32, #tpu.memory_space<vmem>>, vector<6x128xf32>,
    %27 = vector.broadcast %2 : vector<6x1xf32> to vector<6x128xf32>
    %28 = arith.mulf %10, %27 : vector<6x128xf32>
    %c0_11 = arith.constant 0 : index
    %c0_12 = arith.constant 0 : index
    %29 = vector.load %arg5[%c0_11, %c0_12] : memref<6x128xf32, #tpu.memory_space<vmem>>, vector<6x128xf32>
    tpu.vector_store %arg5[%c0_11, %c0_12], %28 {strides = array<i32>} : memref<6x128xf32, #tpu.memory_space<vmem>>, vector<6x128xf32>,
    %30 = vector.broadcast %2 : vector<6x1xf32> to vector<6x128xf32>
    %31 = arith.mulf %24, %30 : vector<6x128xf32>
    %c0_13 = arith.constant 0 : index
    %c0_14 = arith.constant 0 : index
    %32 = vector.load %arg6[%c0_13, %c0_14] : memref<6x128xf32, #tpu.memory_space<vmem>>, vector<6x128xf32>
    tpu.vector_store %arg6[%c0_13, %c0_14], %31 {strides = array<i32>} : memref<6x128xf32, #tpu.memory_space<vmem>>, vector<6x128xf32>,
    return
  }
}

</mosaic_0001>

<llo_original>
// kernel: autoshape_forward.3
$region0: #{autoshape_forward.3}
  #allocation0 [shape = 'u32[]', space=smem, size = 0x4, offset = 0x4, fixed_abs, tag = 'smem constant byte address 0x4 - core index']
  #allocation1 [shape = 'u32[144,128]{1,0:T(1,128)}', space=vmem, size = 0x12000, scoped, tag = 'internal scratch']
  %s0 = inlined_call_operand.vmem [shape: bf16[2,3,256], index: 0, kind: input, shape index: {}]
  %s1 = inlined_call_operand.vmem [shape: bf16[32,3], index: 1, kind: input, shape index: {}]
  %s2 = inlined_call_operand.vmem [shape: f32[32,1], index: 2, kind: input, shape index: {}]
  %s3 = inlined_call_operand.vmem [shape: bf16[8,32], index: 3, kind: input, shape index: {}]
  %s4 = inlined_call_operand.vmem [shape: f32[8,1], index: 4, kind: input, shape index: {}]
  %s5 = inlined_call_operand.vmem [shape: f32[2,6,256], index: 5, kind: output, shape index: {}]
  %s6 = sld [smem:[#allocation0]]
  $region53: #{autoshape_forward.3} parent=0
    _
  %s8 = ssub.s32 1, %s6
  %s9 = scalar_select 0, %s8, %s6
  loop: start=0, step=1, limit=4
  $region2: #{autoshape_forward.3} parent=0 // loop_pre_header
    _
  $region3: #{autoshape_forward.3} parent=0 // loop_header
    %s11 = sphi 0, %s15
    %p12 = scmp.ge.s32.totalorder %s11, 4
    %s18 = sphi 0, %s30
    %s19 = sphi 0, %s26
    %s20 = sphi 0, %s18
    %s21 = sphi 0, %s19
    %s22 = sphi 0, %s20
    %s23 = sphi 0, %s21
    %s35 = sphi 0, %s37
    %s38 = sphi 0, %s35
    %s39 = sphi 0, %s38
    %s55 = sphi 0, %s39
    %s59 = sphi 0, %s59
    %s61 = sphi 0, %s59
    %s62 = sphi 0, %s61
    %s76 = sphi 0, %s62
    %s80 = sphi 0, %s80
    %s82 = sphi 0, %s80
    %s83 = sphi 0, %s82
    %s97 = sphi 0, %s83
    %s101 = sphi 0, %s101
    %s103 = sphi 0, %s101
    %s104 = sphi 0, %s103
    %s118 = sphi 0, %s104
    %s122 = sphi 0, %s122
    %s124 = sphi 0, %s122
    %s125 = sphi 0, %s124
    %s139 = sphi 0, %s125
    %s147 = sphi 0, %s149
    %s150 = sphi 0, %s147
    %s151 = sphi 0, %s150
    %s167 = sphi 0, %s151
  $region4: #{autoshape_forward.3} parent=0 // loop_header_branch
    %14 = sbr.rel (%p12) target = $region8
  $region5: #{autoshape_forward.3} parent=0 // loop_body
    %s16 = ssub.s32 %s11, 1
    %s17 = ssub.s32 %s11, 2
    %s24 = sadd.s32 1, %s19
    %p25 = scmp.ge.s32.totalorder %s24, 1
    %s26 = scalar_select %p25, 0, %s24
    %s27 = sadd.s32 1, %s18
    %s28 = scalar_select %p25, %s27, %s18
    %p29 = scmp.ge.s32.totalorder %s28, 2
    %s30 = scalar_select %p29, 0, %s28
    %s31 = ssub.s32 %s18, %s30
    %s32 = ssub.s32 %s19, %s26
    %s33 = sor.u32 %s31, %s32
    %p34 = scmp.eq.s32.totalorder %s33, 0
    %s36 = sadd.s32 %s35, 1
    %s37 = scalar_select %p34, %s35, %s36
    %p40 = pneg %p34
    %p41 = scmp.eq.s32.totalorder %s11, 1
    %p42 = por %p40, %p41
    %p43 = scmp.ne.s32.totalorder %s35, %s38
    %p44 = scmp.eq.s32.totalorder %s11, 0
    %p45 = por %p43, %p44
    %p46 = scmp.ne.s32.totalorder %s35, %s38
    %p47 = scmp.eq.s32.totalorder %s16, 1
    %p48 = por %p46, %p47
    %p49 = scmp.ne.s32.totalorder %s38, %s39
    %p50 = scmp.eq.s32.totalorder %s16, 0
    %p51 = por %p49, %p50
    %p52 = scmp.ne.s32.totalorder %s38, %s39
    %p53 = scmp.eq.s32.totalorder %s17, 1
    %p54 = por %p52, %p53
    %p56 = scmp.ne.s32.totalorder %s39, %s55
    %p57 = scmp.eq.s32.totalorder %s17, 0
    %p58 = por %p56, %p57
    %s60 = sadd.s32 %s59, 1
    %p63 = scmp.eq.s32.totalorder %s11, 1
    %p64 = scmp.ne.s32.totalorder %s59, %s61
    %p65 = scmp.eq.s32.totalorder %s11, 0
    %p66 = por %p64, %p65
    %p67 = scmp.ne.s32.totalorder %s59, %s61
    %p68 = scmp.eq.s32.totalorder %s16, 1
    %p69 = por %p67, %p68
    %p70 = scmp.ne.s32.totalorder %s61, %s62
    %p71 = scmp.eq.s32.totalorder %s16, 0
    %p72 = por %p70, %p71
    %p73 = scmp.ne.s32.totalorder %s61, %s62
    %p74 = scmp.eq.s32.totalorder %s17, 1
    %p75 = por %p73, %p74
    %p77 = scmp.ne.s32.totalorder %s62, %s76
    %p78 = scmp.eq.s32.totalorder %s17, 0
    %p79 = por %p77, %p78
    %s81 = sadd.s32 %s80, 1
    %p84 = scmp.eq.s32.totalorder %s11, 1
    %p85 = scmp.ne.s32.totalorder %s80, %s82
    %p86 = scmp.eq.s32.totalorder %s11, 0
    %p87 = por %p85, %p86
    %p88 = scmp.ne.s32.totalorder %s80, %s82
    %p89 = scmp.eq.s32.totalorder %s16, 1
    %p90 = por %p88, %p89
    %p91 = scmp.ne.s32.totalorder %s82, %s83
    %p92 = scmp.eq.s32.totalorder %s16, 0
    %p93 = por %p91, %p92
    %p94 = scmp.ne.s32.totalorder %s82, %s83
    %p95 = scmp.eq.s32.totalorder %s17, 1
    %p96 = por %p94, %p95
    %p98 = scmp.ne.s32.totalorder %s83, %s97
    %p99 = scmp.eq.s32.totalorder %s17, 0
    %p100 = por %p98, %p99
    %s102 = sadd.s32 %s101, 1
    %p105 = scmp.eq.s32.totalorder %s11, 1
    %p106 = scmp.ne.s32.totalorder %s101, %s103
    %p107 = scmp.eq.s32.totalorder %s11, 0
    %p108 = por %p106, %p107
    %p109 = scmp.ne.s32.totalorder %s101, %s103
    %p110 = scmp.eq.s32.totalorder %s16, 1
    %p111 = por %p109, %p110
    %p112 = scmp.ne.s32.totalorder %s103, %s104
    %p113 = scmp.eq.s32.totalorder %s16, 0
    %p114 = por %p112, %p113
    %p115 = scmp.ne.s32.totalorder %s103, %s104
    %p116 = scmp.eq.s32.totalorder %s17, 1
    %p117 = por %p115, %p116
    %p119 = scmp.ne.s32.totalorder %s104, %s118
    %p120 = scmp.eq.s32.totalorder %s17, 0
    %p121 = por %p119, %p120
    %s123 = sadd.s32 %s122, 1
    %p126 = scmp.eq.s32.totalorder %s11, 1
    %p127 = scmp.ne.s32.totalorder %s122, %s124
    %p128 = scmp.eq.s32.totalorder %s11, 0
    %p129 = por %p127, %p128
    %p130 = scmp.ne.s32.totalorder %s122, %s124
    %p131 = scmp.eq.s32.totalorder %s16, 1
    %p132 = por %p130, %p131
    %p133 = scmp.ne.s32.totalorder %s124, %s125
    %p134 = scmp.eq.s32.totalorder %s16, 0
    %p135 = por %p133, %p134
    %p136 = scmp.ne.s32.totalorder %s124, %s125
    %p137 = scmp.eq.s32.totalorder %s17, 1
    %p138 = por %p136, %p137
    %p140 = scmp.ne.s32.totalorder %s125, %s139
    %p141 = scmp.eq.s32.totalorder %s17, 0
    %p142 = por %p140, %p141
    %s143 = ssub.s32 %s18, %s30
    %s144 = ssub.s32 %s19, %s26
    %s145 = sor.u32 %s143, %s144
    %p146 = scmp.eq.s32.totalorder %s145, 0
    %s148 = sadd.s32 %s147, 1
    %s149 = scalar_select %p146, %s147, %s148
    %p152 = pneg %p146
    %p153 = scmp.eq.s32.totalorder %s11, 1
    %p154 = por %p152, %p153
    %p155 = scmp.ne.s32.totalorder %s147, %s150
    %p156 = scmp.eq.s32.totalorder %s11, 0
    %p157 = por %p155, %p156
    %p158 = scmp.ne.s32.totalorder %s147, %s150
    %p159 = scmp.eq.s32.totalorder %s16, 1
    %p160 = por %p158, %p159
    %p161 = scmp.ne.s32.totalorder %s150, %s151
    %p162 = scmp.eq.s32.totalorder %s16, 0
    %p163 = por %p161, %p162
    %p164 = scmp.ne.s32.totalorder %s150, %s151
    %p165 = scmp.eq.s32.totalorder %s17, 1
    %p166 = por %p164, %p165
    %p168 = scmp.ne.s32.totalorder %s151, %s167
    %p169 = scmp.eq.s32.totalorder %s17, 0
    %p170 = por %p168, %p169
    %p171 = scmp.le.s32.totalorder 1, %s11
    %p172 = scmp.lt.s32.totalorder %s11, 3
    %p173 = pnand %p171, %p172
    %p174 = pneg %p173
    // Predicated region
    $region9: #{autoshape_forward.3} parent=5 // pred_check
      _
    $region10: #{autoshape_forward.3} parent=5 // pred_check_branch
      %176 = sbr.rel (%p173) target = $region12
    $region11: #{autoshape_forward.3} parent=5 // pred_region
      %s177 = ssub.s32 %s11, 1
      // Predicated region
      $region13: #{autoshape_forward.3} parent=11 // pred_check
        %p178 = pneg %p72
      $region14: #{autoshape_forward.3} parent=11 // pred_check_branch
        %180 = sbr.rel (%p178) target = $region16
      $region15: #{autoshape_forward.3} parent=11 // pred_region
        _
      $region16: #{autoshape_forward.3} parent=11 // pred_fallthru
        _
      // Predicated region
      $region17: #{autoshape_forward.3} parent=11 // pred_check
        %p181 = pneg %p93
      $region18: #{autoshape_forward.3} parent=11 // pred_check_branch
        %183 = sbr.rel (%p181) target = $region20
      $region19: #{autoshape_forward.3} parent=11 // pred_region
        _
      $region20: #{autoshape_forward.3} parent=11 // pred_fallthru
        _
      // Predicated region
      $region21: #{autoshape_forward.3} parent=11 // pred_check
        %p184 = pneg %p114
      $region22: #{autoshape_forward.3} parent=11 // pred_check_branch
        %186 = sbr.rel (%p184) target = $region24
      $region23: #{autoshape_forward.3} parent=11 // pred_region
        _
      $region24: #{autoshape_forward.3} parent=11 // pred_fallthru
        _
      // Predicated region
      $region25: #{autoshape_forward.3} parent=11 // pred_check
        %p187 = pneg %p135
      $region26: #{autoshape_forward.3} parent=11 // pred_check_branch
        %189 = sbr.rel (%p187) target = $region28
      $region27: #{autoshape_forward.3} parent=11 // pred_region
        _
      $region28: #{autoshape_forward.3} parent=11 // pred_fallthru
        _
    $region12: #{autoshape_forward.3} parent=5 // pred_fallthru
      _
    %p190 = scmp.lt.s32.totalorder %s11, 2
    // Predicated region
    $region29: #{autoshape_forward.3} parent=5 // pred_check
      %p191 = pneg %p190
    $region30: #{autoshape_forward.3} parent=5 // pred_check_branch
      %193 = sbr.rel (%p191) target = $region32
    $region31: #{autoshape_forward.3} parent=5 // pred_region
      // Predicated region
      $region33: #{autoshape_forward.3} parent=31 // pred_check
        %p194 = pneg %p45
      $region34: #{autoshape_forward.3} parent=31 // pred_check_branch
        %196 = sbr.rel (%p194) target = $region36
      $region35: #{autoshape_forward.3} parent=31 // pred_region
        %s197 = smul.u32 2, %s19
        %p198 = scmp.lt.s32.totalorder %s18, 1
        %s199 = scalar_select %p198, %s18, 1
        %p200 = scmp.lt.s32.totalorder %s197, 1
        %s201 = scalar_select %p200, %s197, 1
        %s202 = smul.addr %s199, 2
        %s203 = sadd.s32 %s201, %s202
        %s204 = smul.addr %s203, 2
        %s205 = scalar_lea.vmem %s0, %s204
        %s206 = smul.u32 2, %s19
      $region36: #{autoshape_forward.3} parent=31 // pred_fallthru
        _
    $region32: #{autoshape_forward.3} parent=5 // pred_fallthru
      _
    %p207 = scmp.le.s32.totalorder 1, %s11
    %p208 = scmp.lt.s32.totalorder %s11, 3
    %p209 = pnand %p207, %p208
    %p210 = pneg %p209
    // Predicated region
    $region37: #{autoshape_forward.3} parent=5 // pred_check
      _
    $region38: #{autoshape_forward.3} parent=5 // pred_check_branch
      %212 = sbr.rel (%p209) target = $region40
    $region39: #{autoshape_forward.3} parent=5 // pred_region
      %s213 = ssub.s32 %s11, 1
      %s214 = smul.u32 2, %s21
      %p215 = scmp.lt.s32.totalorder %s20, 1
      %s216 = scalar_select %p215, %s20, 1
      %p217 = scmp.lt.s32.totalorder %s214, 1
      %s218 = scalar_select %p217, %s214, 1
      %s219 = smul.addr %s216, 2
      %s220 = sadd.s32 %s218, %s219
      %s221 = smul.addr %s220, 2
      %s222 = scalar_lea.vmem %s0, %s221
      %p223 = pneg %p51
      %p224 = pneg %p48
      %p225 = pneg %p72
      %p226 = pneg %p69
      %p227 = pneg %p93
      %p228 = pneg %p90
      %p229 = pneg %p114
      %p230 = pneg %p111
      %p231 = pneg %p135
      %p232 = pneg %p132
      %p233 = pneg %p163
      %p234 = pneg %p160
      %s235 = smul.u32 2, %s21
      %p236 = scmp.lt.s32.totalorder %s20, 1
      %s237 = scalar_select %p236, %s20, 1
      %p238 = scmp.lt.s32.totalorder %s235, 1
      %s239 = scalar_select %p238, %s235, 1
      %s240 = smul.addr %s237, 2
      %s241 = sadd.s32 %s239, %s240
      %s242 = smul.addr %s241, 8
      %s243 = scalar_lea.vmem %s5, %s242
      %s244 = smul.u32 2, %s21
      %p245 = scmp.lt.s32.totalorder %s20, 1
      %s246 = scalar_select %p245, %s20, 1
      %p247 = scmp.lt.s32.totalorder %s244, 1
      %s248 = scalar_select %p247, %s244, 1
      %s249 = smul.addr %s246, 2
      %s250 = sadd.s32 %s248, %s249
      %s251 = smul.addr %s250, 2
      %s252 = scalar_lea.vmem %s0, %s251
      %s253 = smul.u32 2, %s21
      %s254 = smul.u32 2, %s21
      %p255 = scmp.lt.s32.totalorder %s20, 1
      %s256 = scalar_select %p255, %s20, 1
      %p257 = scmp.lt.s32.totalorder %s254, 1
      %s258 = scalar_select %p257, %s254, 1
      %s259 = smul.addr %s256, 2
      %s260 = sadd.s32 %s258, %s259
      %s261 = smul.addr %s260, 8
      %s262 = scalar_lea.vmem %s5, %s261
      %s263 = smul.u32 2, %s21
      %v265 = vld [vmem:[%s252] sm:$0xf]
      %v266 = vld [vmem:[%s1] sm:$0xf]
      %v267 = vld [vmem:[%s1 + $0x4] sm:$0xf]
      %v268 = vld [vmem:[%s1 + $0x8] sm:$0xf]
      %v269 = vld [vmem:[%s1 + $0xc] sm:$0xf]
      %v270 = vld [vmem:[%s2] sm:$0xff]
      %v271 = vld [vmem:[%s2 + $0x8] sm:$0xff]
      %v272 = vld [vmem:[%s2 + $0x10] sm:$0xff]
      %v273 = vld [vmem:[%s2 + $0x18] sm:$0xff]
      %275 = vset.pattern.permute.xlu0 0
      %276 = vperm.xlu0 %275, %v270
      %v277 = vpop.permute.xlu0 %276
      %280 = vset.pattern.permute.xlu0 0
      %281 = vperm.xlu0 %280, %v271
      %v282 = vpop.permute.xlu0 %281
      %285 = vset.pattern.permute.xlu0 0
      %286 = vperm.xlu0 %285, %v272
      %v287 = vpop.permute.xlu0 %286
      %290 = vset.pattern.permute.xlu0 0
      %291 = vperm.xlu0 %290, %v273
      %v292 = vpop.permute.xlu0 %291
      %v298 = vunpack.c.l.b16 %v266
      %v299 = vunpack.c.l.b16 %v267
      %v300 = vunpack.c.l.b16 %v268
      %v301 = vunpack.c.l.b16 %v269
      %v302 = vpack.c.b16 %v299, %v298
      %v303 = vpack.c.b16 %v301, %v300
      %v306 = vunpack.c.l.s4 1983009808
      %v307 = vunpack.c.0.s8 %v306
      %v308 = vlaneseq
      %v309 = vshrl.u32 %v308, 7
      %v310 = vsub.s32 %v307, %v309
      %v311 = vrot.slane %v265, %v310
      %v312 = vcombine.high %v311, %v311
      %vm313 = vcmask 23552
      %v315 = vsel %vm313, %v302, 0
      %v318 = vsel %vm313, %v303, 0
      %vm320 = vcmask 1040384
      %vm321 = vcmask 1041408
      %v322 = vsel %vm320, 4294967295, 65535
      %v323 = vsel %vm321, %v322, 0
      %v325 = vand.u32 %v311, %v323
      %v328 = vand.u32 %v312, %v323
      %330 = vmatprep.subr.bf16.mxu0 0
      %331 = vmatpush1.bf16.msra.mxu0 0
      %332 = vmatprep.subr.bf16.mxu0 0
      %333 = vmatpush1.bf16.msra.mxu0 0
      %334 = vmatprep.subr.bf16.mxu0 0
      %335 = vmatpush1.bf16.msra.mxu0 0
      %336 = vmatprep.subr.bf16.mxu0 0
      %337 = vmatpush1.bf16.msra.mxu0 0
      %338 = vmatprep.subr.bf16.mxu0 0
      %339 = vmatpush1.bf16.msra.mxu0 0
      %340 = vmatprep.subr.bf16.mxu0 0
      %341 = vmatpush1.bf16.msra.mxu0 0
      %342 = vmatprep.subr.bf16.mxu0 0
      %343 = vmatpush1.bf16.msra.mxu0 0
      %344 = vmatprep.subr.bf16.mxu0 %v328
      %345 = vmatpush1.bf16.msra.mxu0 %v325
      %346 = vmatprep.subr.bf16.mxu0 0
      %347 = vmatpush2.bf16.msra.mxu0 0
      %348 = vmatprep.subr.bf16.mxu0 0
      %349 = vmatpush2.bf16.msra.mxu0 0
      %350 = vmatprep.subr.bf16.mxu0 0
      %351 = vmatpush2.bf16.msra.mxu0 0
      %352 = vmatprep.subr.bf16.mxu0 0
      %353 = vmatpush2.bf16.msra.mxu0 0
      %354 = vmatprep.subr.bf16.mxu0 0
      %355 = vmatpush2.bf16.msra.mxu0 0
      %356 = vmatprep.subr.bf16.mxu0 0
      %357 = vmatpush2.bf16.msra.mxu0 0
      %358 = vmatprep.subr.bf16.mxu0 0
      %359 = vmatpush2.bf16.msra.mxu0 0
      %360 = vmatprep.subr.bf16.mxu0 0
      %361 = vmatpush2.bf16.msra.mxu0 0
      %362 = vmatprep.mubr.bf16.mxu0 0
      %363 = vmatmul.mubr.bf16.gmra.mxu0 %v315
      %v364 = vpop.f32.mrf.mxu0
      %v365 = vadd.f32 %v277, %v364
      %v366 = vpop.f32.mrf.mxu0
      %v367 = vadd.f32 %v277, %v366
      %v368 = vpop.f32.mrf.mxu0
      %v369 = vadd.f32 %v282, %v368
      %v370 = vpop.f32.mrf.mxu0
      %v371 = vadd.f32 %v282, %v370
      %372 = vmatprep.mubr.bf16.mxu0 0
      %373 = vmatmul.mubr.bf16.gmra.mxu0 %v318
      %v374 = vpop.f32.mrf.mxu0
      %v375 = vadd.f32 %v287, %v374
      %v376 = vpop.f32.mrf.mxu0
      %v377 = vadd.f32 %v287, %v376
      %v378 = vpop.f32.mrf.mxu0
      %v379 = vadd.f32 %v292, %v378
      %v380 = vpop.f32.mrf.mxu0
      %v381 = vadd.f32 %v292, %v380
      %382 = vdwg.mxu0
      %v383 = vmax.f32 %v365, 0.0
      %v384 = vmax.f32 %v367, 0.0
      %v385 = vmax.f32 %v369, 0.0
      %v386 = vmax.f32 %v371, 0.0
      %v387 = vmax.f32 %v375, 0.0
      %v388 = vmax.f32 %v377, 0.0
      %v389 = vmax.f32 %v379, 0.0
      %v390 = vmax.f32 %v381, 0.0
      %v391 = vld [vmem:[%s3] sm:$0xf]
      %v392 = vpack.c.bf16 %v385, %v383
      %v393 = vpack.c.bf16 %v386, %v384
      %v394 = vpack.c.bf16 %v389, %v387
      %v395 = vpack.c.bf16 %v390, %v388
      %v396 = vld [vmem:[%s4] sm:$0xff]
      %398 = vset.pattern.permute.xlu0 0
      %399 = vperm.xlu0 %398, %v396
      %v400 = vpop.permute.xlu0 %399
      %vm402 = vcmask 261120
      %v404 = vsel %vm402, %v391, 0
      %406 = vmatprep.subr.bf16.mxu0 0
      %407 = vmatpush1.bf16.msra.mxu0 0
      %408 = vmatprep.subr.bf16.mxu0 0
      %409 = vmatpush1.bf16.msra.mxu0 0
      %410 = vmatprep.subr.bf16.mxu0 0
      %411 = vmatpush1.bf16.msra.mxu0 0
      %412 = vmatprep.subr.bf16.mxu0 0
      %413 = vmatpush1.bf16.msra.mxu0 0
      %414 = vmatprep.subr.bf16.mxu0 0
      %415 = vmatpush1.bf16.msra.mxu0 0
      %416 = vmatprep.subr.bf16.mxu0 0
      %417 = vmatpush1.bf16.msra.mxu0 0
      %418 = vmatprep.subr.bf16.mxu0 %v395
      %419 = vmatpush1.bf16.msra.mxu0 %v394
      %420 = vmatprep.subr.bf16.mxu0 %v393
      %421 = vmatpush1.bf16.msra.mxu0 %v392
      %422 = vmatprep.subr.bf16.mxu0 0
      %423 = vmatpush2.bf16.msra.mxu0 0
      %424 = vmatprep.subr.bf16.mxu0 0
      %425 = vmatpush2.bf16.msra.mxu0 0
      %426 = vmatprep.subr.bf16.mxu0 0
      %427 = vmatpush2.bf16.msra.mxu0 0
      %428 = vmatprep.subr.bf16.mxu0 0
      %429 = vmatpush2.bf16.msra.mxu0 0
      %430 = vmatprep.subr.bf16.mxu0 0
      %431 = vmatpush2.bf16.msra.mxu0 0
      %432 = vmatprep.subr.bf16.mxu0 0
      %433 = vmatpush2.bf16.msra.mxu0 0
      %434 = vmatprep.subr.bf16.mxu0 0
      %435 = vmatpush2.bf16.msra.mxu0 0
      %436 = vmatprep.subr.bf16.mxu0 0
      %437 = vmatpush2.bf16.msra.mxu0 0
      %438 = vmatprep.mubr.bf16.mxu0 0
      %439 = vmatmul.mubr.bf16.gmra.mxu0 %v404
      %v440 = vpop.f32.mrf.mxu0
      %v441 = vadd.f32 %v400, %v440
      %v442 = vpop.f32.mrf.mxu0
      %v443 = vadd.f32 %v400, %v442
      %v444 = vpop.f32.mrf.mxu0
      %v445 = vpop.f32.mrf.mxu0
      %446 = vdwg.mxu0
      %v447 = vxor.u32 %v441, 2147483648
      %v448 = vxor.u32 %v443, 2147483648
      %v449 = vmul.f32 %v447, 1.442695
      %v450 = vpow.pop %v449
      %v451 = vmul.f32 %v448, 1.442695
      %v452 = vpow.pop %v451
      %v453 = vadd.f32 %v450, 1.0
      %v454 = vadd.f32 %v452, 1.0
      %v455 = vrcp.pop %v453
      %v456 = vmul.f32 1.0, %v455
      %v457 = vrcp.pop %v454
      %v458 = vmul.f32 1.0, %v457
      %v459 = vlaneseq
      %v460 = vand.u32 %v459, 127
      %v461 = vadd.s32 %v460, 128
      %s462 = smul.u32 %s21, 256
      %v463 = vstv %s462
      %v464 = vadd.s32 %v460, %v463
      %v465 = vadd.s32 %v461, %v463
      %v466 = vand.u32 %v464, 15
      %v467 = vand.u32 %v465, 15
      %v468 = vcvt.s32.f32 %v466
      %v469 = vcvt.s32.f32 %v467
      %v470 = vshra.s32 %v464, 4
      %v471 = vshra.s32 %v465, 4
      %v472 = vcvt.s32.f32 %v470
      %v473 = vcvt.s32.f32 %v471
      %v474 = vmul.f32 %v456, 2.0
      %v475 = vmul.f32 %v458, 2.0
      %v476 = vsub.f32 %v474, 0.5
      %v477 = vsub.f32 %v475, 0.5
      %v478 = vadd.f32 %v476, %v468
      %v479 = vadd.f32 %v477, %v469
      %v480 = vadd.f32 %v476, %v472
      %v481 = vadd.f32 %v477, %v473
      %v482 = vmul.f32 %v474, %v474
      %v483 = vmul.f32 %v475, %v475
      %v484 = vmul.f32 %v482, 4.0
      %v485 = vmul.f32 %v483, 4.0
      %v488 = vrot.slane %v456, 7
      %v489 = vrot.slane %v458, 7
      %v492 = vmul.f32 %v456, %v488
      %v493 = vmul.f32 %v458, %v489
      %vm494 = vcmp.gt.f32.partialorder %v492, 0.0
      %vm495 = vcmp.gt.f32.partialorder %v493, 0.0
      %v496 = vsel %vm494, %v492, 0.0
      %v497 = vsel %vm495, %v493, 0.0
      %v498 = vrot.slane %v456, 6
      %v499 = vrot.slane %v458, 6
      %v502 = vmul.f32 %v456, %v498
      %v503 = vmul.f32 %v458, %v499
      %v506 = vrot.slane %v496, 7
      %v507 = vrot.slane %v497, 7
      %vm510 = vcmp.gt.f32.partialorder %v502, %v506
      %vm511 = vcmp.gt.f32.partialorder %v503, %v507
      %v512 = vsel %vm510, 1.0, 0.0
      %v513 = vsel %vm511, 1.0, 0.0
      %v514 = vsel %vm510, %v502, %v506
      %v515 = vsel %vm511, %v503, %v507
      %v516 = vrot.slane %v456, 5
      %v517 = vrot.slane %v458, 5
      %v520 = vmul.f32 %v456, %v516
      %v521 = vmul.f32 %v458, %v517
      %v524 = vrot.slane %v514, 7
      %v525 = vrot.slane %v515, 7
      %vm528 = vcmp.gt.f32.partialorder %v520, %v524
      %vm529 = vcmp.gt.f32.partialorder %v521, %v525
      %v532 = vrot.slane %v512, 7
      %v533 = vrot.slane %v513, 7
      %v536 = vsel %vm528, 2.0, %v532
      %v537 = vsel %vm529, 2.0, %v533
      %v538 = vsel %vm528, %v520, %v524
      %v539 = vsel %vm529, %v521, %v525
      %vm540 = vcmp.lt.s32.totalorder %v464, 256
      %vm541 = vcmp.lt.s32.totalorder %v465, 256
      %v542 = vsel %vm540, %v538, 0.0
      %v543 = vsel %vm541, %v539, 0.0
      %v544 = vmul.f32 %v484, 0.5
      %v545 = vmul.f32 %v485, 0.5
      %v548 = vrot.slane %v544, 2
      %v549 = vrot.slane %v545, 2
      %v552 = vsub.f32 %v478, %v548
      %v553 = vsub.f32 %v479, %v549
      %v554 = vsub.f32 %v480, %v548
      %v555 = vsub.f32 %v481, %v549
      %v556 = vadd.f32 %v478, %v548
      %v557 = vadd.f32 %v479, %v549
      %v558 = vadd.f32 %v480, %v548
      %v559 = vadd.f32 %v481, %v549
      %v562 = vrot.slane %v556, 6
      %v563 = vrot.slane %v557, 6
      %v568 = vrot.slane %v558, 6
      %v569 = vrot.slane %v559, 6
      %v574 = vrot.slane %v542, 3
      %v575 = vrot.slane %v543, 3
      %v580 = vrot.slane %v536, 2
      %v581 = vrot.slane %v537, 2
      %v584 = vsel %vm320, %v552, %v554
      %v585 = vsel %vm320, %v553, %v555
      %v586 = vsel %vm321, %v584, %v562
      %v587 = vsel %vm321, %v585, %v563
      %vm588 = vcmask 1042432
      %v589 = vsel %vm588, %v586, %v568
      %v590 = vsel %vm588, %v587, %v569
      %vm591 = vcmask 1043456
      %v592 = vsel %vm591, %v589, %v574
      %v593 = vsel %vm591, %v590, %v575
      %vm594 = vcmask 1044480
      %v595 = vsel %vm594, %v592, %v580
      %v596 = vsel %vm594, %v593, %v581
      %597 = vst [vmem:[%s262] sm:$0x3f] %v595
      %598 = vst [vmem:[%s262 + $0x8] sm:$0x3f] %v596
      %s599 = smul.u32 2, %s21
      %p600 = scmp.lt.s32.totalorder %s20, 1
      %s601 = scalar_select %p600, %s20, 1
      %p602 = scmp.lt.s32.totalorder %s599, 1
      %s603 = scalar_select %p602, %s599, 1
      %s604 = smul.addr %s601, 2
      %s605 = sadd.s32 %s603, %s604
      %s606 = smul.addr %s605, 8
      %s607 = scalar_lea.vmem %s5, %s606
      // Predicated region
      $region41: #{autoshape_forward.3} parent=39 // pred_check
        %p608 = pneg %p160
      $region42: #{autoshape_forward.3} parent=39 // pred_check_branch
        %610 = sbr.rel (%p608) target = $region44
      $region43: #{autoshape_forward.3} parent=39 // pred_region
        %s611 = smul.u32 2, %s21
      $region44: #{autoshape_forward.3} parent=39 // pred_fallthru
        _
    $region40: #{autoshape_forward.3} parent=5 // pred_fallthru
      _
    %p612 = scmp.le.s32.totalorder 2, %s11
    // Predicated region
    $region45: #{autoshape_forward.3} parent=5 // pred_check
      %p613 = pneg %p612
    $region46: #{autoshape_forward.3} parent=5 // pred_check_branch
      %615 = sbr.rel (%p613) target = $region48
    $region47: #{autoshape_forward.3} parent=5 // pred_region
      %s616 = ssub.s32 %s11, 2
      // Predicated region
      $region49: #{autoshape_forward.3} parent=47 // pred_check
        %p617 = pneg %p166
      $region50: #{autoshape_forward.3} parent=47 // pred_check_branch
        %619 = sbr.rel (%p617) target = $region52
      $region51: #{autoshape_forward.3} parent=47 // pred_region
        %s620 = smul.u32 2, %s23
        %p621 = scmp.lt.s32.totalorder %s22, 1
        %s622 = scalar_select %p621, %s22, 1
        %p623 = scmp.lt.s32.totalorder %s620, 1
        %s624 = scalar_select %p623, %s620, 1
        %s625 = smul.addr %s622, 2
        %s626 = sadd.s32 %s624, %s625
        %s627 = smul.addr %s626, 8
        %s628 = scalar_lea.vmem %s5, %s627
      $region52: #{autoshape_forward.3} parent=47 // pred_fallthru
        _
    $region48: #{autoshape_forward.3} parent=5 // pred_fallthru
      _
  $region6: #{autoshape_forward.3} parent=0 // loop_footer
    %s15 = sadd.s32 1, %s11
  $region7: #{autoshape_forward.3} parent=0 // loop_footer_branch
    %10 = sbr.rel target = $region3
  $region8: #{autoshape_forward.3} parent=0 // loop_exit
    _

// kernel: autoshape_forward.4
$region0: #{autoshape_forward.4}
  #allocation0 [shape = 'u32[]', space=smem, size = 0x4, offset = 0x4, fixed_abs, tag = 'smem constant byte address 0x4 - core index']
  #allocation1 [shape = 'u32[144,128]{1,0:T(1,128)}', space=vmem, size = 0x12000, scoped, tag = 'internal scratch']
  #allocation2 [shape = 'f32[128,128]{1,0:T(8,128)}', space=vmem, size = 0x10000, scoped, tag = 'scratch operand']
  %s0 = inlined_call_operand.vmem [shape: f32[2,128,4], index: 0, kind: input, shape index: {}]
  %s1 = inlined_call_operand.vmem [shape: f32[2,4,128], index: 1, kind: input, shape index: {}]
  %s2 = inlined_call_operand.vmem [shape: f32[2,1,128], index: 2, kind: input, shape index: {}]
  %s3 = inlined_call_operand.vmem [shape: f32[2,1,128], index: 3, kind: output, shape index: {}]
  %s4 = sld [smem:[#allocation0]]
  $region52: #{autoshape_forward.4} parent=0
    _
  %s6 = ssub.s32 1, %s4
  %s7 = scalar_select 0, %s6, %s4
  loop: start=0, step=1, limit=4
  $region2: #{autoshape_forward.4} parent=0 // loop_pre_header
    _
  $region3: #{autoshape_forward.4} parent=0 // loop_header
    %s9 = sphi 0, %s13
    %p10 = scmp.ge.s32.totalorder %s9, 4
    %s19 = sphi 0, %s21
    %s22 = sphi 0, %s19
    %s23 = sphi 0, %s22
    %s39 = sphi 0, %s23
    %s45 = sphi 0, %s47
    %s48 = sphi 0, %s45
    %s49 = sphi 0, %s48
    %s65 = sphi 0, %s49
    %s71 = sphi 0, %s73
    %s74 = sphi 0, %s71
    %s75 = sphi 0, %s74
    %s91 = sphi 0, %s75
    %s97 = sphi 0, %s99
    %s100 = sphi 0, %s97
    %s101 = sphi 0, %s100
    %s117 = sphi 0, %s101
  $region4: #{autoshape_forward.4} parent=0 // loop_header_branch
    %12 = sbr.rel (%p10) target = $region8
  $region5: #{autoshape_forward.4} parent=0 // loop_body
    %s14 = ssub.s32 %s9, 1
    %s15 = ssub.s32 %s9, 2
    %s16 = sadd.s32 %s9, 1
    %s17 = ssub.s32 %s9, %s16
    %p18 = scmp.eq.s32.totalorder %s17, 0
    %s20 = sadd.s32 %s19, 1
    %s21 = scalar_select %p18, %s19, %s20
    %p24 = pneg %p18
    %p25 = scmp.eq.s32.totalorder %s9, 1
    %p26 = por %p24, %p25
    %p27 = scmp.ne.s32.totalorder %s19, %s22
    %p28 = scmp.eq.s32.totalorder %s9, 0
    %p29 = por %p27, %p28
    %p30 = scmp.ne.s32.totalorder %s19, %s22
    %p31 = scmp.eq.s32.totalorder %s14, 1
    %p32 = por %p30, %p31
    %p33 = scmp.ne.s32.totalorder %s22, %s23
    %p34 = scmp.eq.s32.totalorder %s14, 0
    %p35 = por %p33, %p34
    %p36 = scmp.ne.s32.totalorder %s22, %s23
    %p37 = scmp.eq.s32.totalorder %s15, 1
    %p38 = por %p36, %p37
    %p40 = scmp.ne.s32.totalorder %s23, %s39
    %p41 = scmp.eq.s32.totalorder %s15, 0
    %p42 = por %p40, %p41
    %s43 = ssub.s32 %s9, %s16
    %p44 = scmp.eq.s32.totalorder %s43, 0
    %s46 = sadd.s32 %s45, 1
    %s47 = scalar_select %p44, %s45, %s46
    %p50 = pneg %p44
    %p51 = scmp.eq.s32.totalorder %s9, 1
    %p52 = por %p50, %p51
    %p53 = scmp.ne.s32.totalorder %s45, %s48
    %p54 = scmp.eq.s32.totalorder %s9, 0
    %p55 = por %p53, %p54
    %p56 = scmp.ne.s32.totalorder %s45, %s48
    %p57 = scmp.eq.s32.totalorder %s14, 1
    %p58 = por %p56, %p57
    %p59 = scmp.ne.s32.totalorder %s48, %s49
    %p60 = scmp.eq.s32.totalorder %s14, 0
    %p61 = por %p59, %p60
    %p62 = scmp.ne.s32.totalorder %s48, %s49
    %p63 = scmp.eq.s32.totalorder %s15, 1
    %p64 = por %p62, %p63
    %p66 = scmp.ne.s32.totalorder %s49, %s65
    %p67 = scmp.eq.s32.totalorder %s15, 0
    %p68 = por %p66, %p67
    %s69 = ssub.s32 %s9, %s16
    %p70 = scmp.eq.s32.totalorder %s69, 0
    %s72 = sadd.s32 %s71, 1
    %s73 = scalar_select %p70, %s71, %s72
    %p76 = pneg %p70
    %p77 = scmp.eq.s32.totalorder %s9, 1
    %p78 = por %p76, %p77
    %p79 = scmp.ne.s32.totalorder %s71, %s74
    %p80 = scmp.eq.s32.totalorder %s9, 0
    %p81 = por %p79, %p80
    %p82 = scmp.ne.s32.totalorder %s71, %s74
    %p83 = scmp.eq.s32.totalorder %s14, 1
    %p84 = por %p82, %p83
    %p85 = scmp.ne.s32.totalorder %s74, %s75
    %p86 = scmp.eq.s32.totalorder %s14, 0
    %p87 = por %p85, %p86
    %p88 = scmp.ne.s32.totalorder %s74, %s75
    %p89 = scmp.eq.s32.totalorder %s15, 1
    %p90 = por %p88, %p89
    %p92 = scmp.ne.s32.totalorder %s75, %s91
    %p93 = scmp.eq.s32.totalorder %s15, 0
    %p94 = por %p92, %p93
    %s95 = ssub.s32 %s9, %s16
    %p96 = scmp.eq.s32.totalorder %s95, 0
    %s98 = sadd.s32 %s97, 1
    %s99 = scalar_select %p96, %s97, %s98
    %p102 = pneg %p96
    %p103 = scmp.eq.s32.totalorder %s9, 1
    %p104 = por %p102, %p103
    %p105 = scmp.ne.s32.totalorder %s97, %s100
    %p106 = scmp.eq.s32.totalorder %s9, 0
    %p107 = por %p105, %p106
    %p108 = scmp.ne.s32.totalorder %s97, %s100
    %p109 = scmp.eq.s32.totalorder %s14, 1
    %p110 = por %p108, %p109
    %p111 = scmp.ne.s32.totalorder %s100, %s101
    %p112 = scmp.eq.s32.totalorder %s14, 0
    %p113 = por %p111, %p112
    %p114 = scmp.ne.s32.totalorder %s100, %s101
    %p115 = scmp.eq.s32.totalorder %s15, 1
    %p116 = por %p114, %p115
    %p118 = scmp.ne.s32.totalorder %s101, %s117
    %p119 = scmp.eq.s32.totalorder %s15, 0
    %p120 = por %p118, %p119
    %p121 = scmp.le.s32.totalorder 1, %s9
    %p122 = scmp.lt.s32.totalorder %s9, 3
    %p123 = pnand %p121, %p122
    %p124 = pneg %p123
    // Predicated region
    $region9: #{autoshape_forward.4} parent=5 // pred_check
      _
    $region10: #{autoshape_forward.4} parent=5 // pred_check_branch
      %126 = sbr.rel (%p123) target = $region12
    $region11: #{autoshape_forward.4} parent=5 // pred_region
      %s127 = ssub.s32 %s9, 1
    $region12: #{autoshape_forward.4} parent=5 // pred_fallthru
      _
    %p128 = scmp.lt.s32.totalorder %s9, 2
    // Predicated region
    $region13: #{autoshape_forward.4} parent=5 // pred_check
      %p129 = pneg %p128
    $region14: #{autoshape_forward.4} parent=5 // pred_check_branch
      %131 = sbr.rel (%p129) target = $region16
    $region15: #{autoshape_forward.4} parent=5 // pred_region
      // Predicated region
      $region17: #{autoshape_forward.4} parent=15 // pred_check
        %p132 = pneg %p29
      $region18: #{autoshape_forward.4} parent=15 // pred_check_branch
        %134 = sbr.rel (%p132) target = $region20
      $region19: #{autoshape_forward.4} parent=15 // pred_region
        %p135 = scmp.lt.s32.totalorder %s9, 1
        %s136 = scalar_select %p135, %s9, 1
        %s137 = smul.addr %s136, 16
        %s138 = smul.addr %s137, 8
        %s139 = scalar_lea.vmem %s0, %s138
      $region20: #{autoshape_forward.4} parent=15 // pred_fallthru
        _
      // Predicated region
      $region21: #{autoshape_forward.4} parent=15 // pred_check
        %p140 = pneg %p55
      $region22: #{autoshape_forward.4} parent=15 // pred_check_branch
        %142 = sbr.rel (%p140) target = $region24
      $region23: #{autoshape_forward.4} parent=15 // pred_region
        %p143 = scmp.lt.s32.totalorder %s9, 1
        %s144 = scalar_select %p143, %s9, 1
        %s145 = smul.addr %s144, 4
        %s146 = scalar_lea.vmem %s1, %s145
      $region24: #{autoshape_forward.4} parent=15 // pred_fallthru
        _
      // Predicated region
      $region25: #{autoshape_forward.4} parent=15 // pred_check
        %p147 = pneg %p81
      $region26: #{autoshape_forward.4} parent=15 // pred_check_branch
        %149 = sbr.rel (%p147) target = $region28
      $region27: #{autoshape_forward.4} parent=15 // pred_region
        %p150 = scmp.lt.s32.totalorder %s9, 1
        %s151 = scalar_select %p150, %s9, 1
        %s152 = scalar_lea.vmem %s2, %s151
      $region28: #{autoshape_forward.4} parent=15 // pred_fallthru
        _
    $region16: #{autoshape_forward.4} parent=5 // pred_fallthru
      _
    %p153 = scmp.le.s32.totalorder 1, %s9
    %p154 = scmp.lt.s32.totalorder %s9, 3
    %p155 = pnand %p153, %p154
    %p156 = pneg %p155
    // Predicated region
    $region29: #{autoshape_forward.4} parent=5 // pred_check
      _
    $region30: #{autoshape_forward.4} parent=5 // pred_check_branch
      %158 = sbr.rel (%p155) target = $region32
    $region31: #{autoshape_forward.4} parent=5 // pred_region
      %s159 = ssub.s32 %s9, 1
      %p160 = scmp.lt.s32.totalorder %s14, 1
      %s161 = scalar_select %p160, %s14, 1
      %s162 = smul.addr %s161, 16
      %s163 = smul.addr %s162, 8
      %s164 = scalar_lea.vmem %s0, %s163
      %p165 = pneg %p35
      %p166 = pneg %p32
      %p167 = scmp.lt.s32.totalorder %s14, 1
      %s168 = scalar_select %p167, %s14, 1
      %s169 = smul.addr %s168, 4
      %s170 = scalar_lea.vmem %s1, %s169
      %p171 = pneg %p61
      %p172 = pneg %p58
      %p173 = scmp.lt.s32.totalorder %s14, 1
      %s174 = scalar_select %p173, %s14, 1
      %s175 = scalar_lea.vmem %s2, %s174
      %p176 = pneg %p87
      %p177 = pneg %p84
      %p178 = pneg %p113
      %p179 = pneg %p110
      %p180 = scmp.lt.s32.totalorder %s14, 1
      %s181 = scalar_select %p180, %s14, 1
      %s182 = scalar_lea.vmem %s3, %s181
      %p183 = scmp.lt.s32.totalorder %s14, 1
      %s184 = scalar_select %p183, %s14, 1
      %s185 = smul.addr %s184, 16
      %s186 = smul.addr %s185, 8
      %s187 = scalar_lea.vmem %s0, %s186
      %p188 = scmp.lt.s32.totalorder %s14, 1
      %s189 = scalar_select %p188, %s14, 1
      %s190 = smul.addr %s189, 4
      %s191 = scalar_lea.vmem %s1, %s190
      %p192 = scmp.lt.s32.totalorder %s14, 1
      %s193 = scalar_select %p192, %s14, 1
      %s194 = scalar_lea.vmem %s2, %s193
      %p195 = scmp.lt.s32.totalorder %s14, 1
      %s196 = scalar_select %p195, %s14, 1
      %s197 = scalar_lea.vmem %s3, %s196
      %v198 = vld [vmem:[%s187] sm:$0xff]
      %v199 = vld [vmem:[%s187 + $0x8] sm:$0xff]
      %v200 = vld [vmem:[%s187 + $0x10] sm:$0xff]
      %v201 = vld [vmem:[%s187 + $0x18] sm:$0xff]
      %v202 = vld [vmem:[%s187 + $0x20] sm:$0xff]
      %v203 = vld [vmem:[%s187 + $0x28] sm:$0xff]
      %v204 = vld [vmem:[%s187 + $0x30] sm:$0xff]
      %v205 = vld [vmem:[%s187 + $0x38] sm:$0xff]
      %v206 = vld [vmem:[%s187 + $0x40] sm:$0xff]
      %v207 = vld [vmem:[%s187 + $0x48] sm:$0xff]
      %v208 = vld [vmem:[%s187 + $0x50] sm:$0xff]
      %v209 = vld [vmem:[%s187 + $0x58] sm:$0xff]
      %v210 = vld [vmem:[%s187 + $0x60] sm:$0xff]
      %v211 = vld [vmem:[%s187 + $0x68] sm:$0xff]
      %v212 = vld [vmem:[%s187 + $0x70] sm:$0xff]
      %v213 = vld [vmem:[%s187 + $0x78] sm:$0xff]
      %v214 = vld [vmem:[%s191] sm:$0xf]
      %231 = vrot.lane.b32.xlu0 %v198, 2
      %v232 = vpop.permute.xlu0 %231
      %233 = vrot.lane.b32.xlu0 %v199, 2
      %v234 = vpop.permute.xlu0 %233
      %235 = vrot.lane.b32.xlu0 %v200, 2
      %v236 = vpop.permute.xlu0 %235
      %237 = vrot.lane.b32.xlu0 %v201, 2
      %v238 = vpop.permute.xlu0 %237
      %239 = vrot.lane.b32.xlu0 %v202, 2
      %v240 = vpop.permute.xlu0 %239
      %241 = vrot.lane.b32.xlu0 %v203, 2
      %v242 = vpop.permute.xlu0 %241
      %243 = vrot.lane.b32.xlu0 %v204, 2
      %v244 = vpop.permute.xlu0 %243
      %245 = vrot.lane.b32.xlu0 %v205, 2
      %v246 = vpop.permute.xlu0 %245
      %247 = vrot.lane.b32.xlu0 %v206, 2
      %v248 = vpop.permute.xlu0 %247
      %249 = vrot.lane.b32.xlu0 %v207, 2
      %v250 = vpop.permute.xlu0 %249
      %251 = vrot.lane.b32.xlu0 %v208, 2
      %v252 = vpop.permute.xlu0 %251
      %253 = vrot.lane.b32.xlu0 %v209, 2
      %v254 = vpop.permute.xlu0 %253
      %255 = vrot.lane.b32.xlu0 %v210, 2
      %v256 = vpop.permute.xlu0 %255
      %257 = vrot.lane.b32.xlu0 %v211, 2
      %v258 = vpop.permute.xlu0 %257
      %259 = vrot.lane.b32.xlu0 %v212, 2
      %v260 = vpop.permute.xlu0 %259
      %261 = vrot.lane.b32.xlu0 %v213, 2
      %v262 = vpop.permute.xlu0 %261
      %v279 = vsub.f32 %v198, %v232
      %v280 = vsub.f32 %v199, %v234
      %v281 = vsub.f32 %v200, %v236
      %v282 = vsub.f32 %v201, %v238
      %v283 = vsub.f32 %v202, %v240
      %v284 = vsub.f32 %v203, %v242
      %v285 = vsub.f32 %v204, %v244
      %v286 = vsub.f32 %v205, %v246
      %v287 = vsub.f32 %v206, %v248
      %v288 = vsub.f32 %v207, %v250
      %v289 = vsub.f32 %v208, %v252
      %v290 = vsub.f32 %v209, %v254
      %v291 = vsub.f32 %v210, %v256
      %v292 = vsub.f32 %v211, %v258
      %v293 = vsub.f32 %v212, %v260
      %v294 = vsub.f32 %v213, %v262
      %311 = vrot.lane.b32.xlu0 %v279, 127
      %v312 = vpop.permute.xlu0 %311
      %313 = vrot.lane.b32.xlu0 %v280, 127
      %v314 = vpop.permute.xlu0 %313
      %315 = vrot.lane.b32.xlu0 %v281, 127
      %v316 = vpop.permute.xlu0 %315
      %317 = vrot.lane.b32.xlu0 %v282, 127
      %v318 = vpop.permute.xlu0 %317
      %319 = vrot.lane.b32.xlu0 %v283, 127
      %v320 = vpop.permute.xlu0 %319
      %321 = vrot.lane.b32.xlu0 %v284, 127
      %v322 = vpop.permute.xlu0 %321
      %323 = vrot.lane.b32.xlu0 %v285, 127
      %v324 = vpop.permute.xlu0 %323
      %325 = vrot.lane.b32.xlu0 %v286, 127
      %v326 = vpop.permute.xlu0 %325
      %327 = vrot.lane.b32.xlu0 %v287, 127
      %v328 = vpop.permute.xlu0 %327
      %329 = vrot.lane.b32.xlu0 %v288, 127
      %v330 = vpop.permute.xlu0 %329
      %331 = vrot.lane.b32.xlu0 %v289, 127
      %v332 = vpop.permute.xlu0 %331
      %333 = vrot.lane.b32.xlu0 %v290, 127
      %v334 = vpop.permute.xlu0 %333
      %335 = vrot.lane.b32.xlu0 %v291, 127
      %v336 = vpop.permute.xlu0 %335
      %337 = vrot.lane.b32.xlu0 %v292, 127
      %v338 = vpop.permute.xlu0 %337
      %339 = vrot.lane.b32.xlu0 %v293, 127
      %v340 = vpop.permute.xlu0 %339
      %341 = vrot.lane.b32.xlu0 %v294, 127
      %v342 = vpop.permute.xlu0 %341
      %v359 = vmul.f32 %v279, %v312
      %v360 = vmul.f32 %v280, %v314
      %v361 = vmul.f32 %v281, %v316
      %v362 = vmul.f32 %v282, %v318
      %v363 = vmul.f32 %v283, %v320
      %v364 = vmul.f32 %v284, %v322
      %v365 = vmul.f32 %v285, %v324
      %v366 = vmul.f32 %v286, %v326
      %v367 = vmul.f32 %v287, %v328
      %v368 = vmul.f32 %v288, %v330
      %v369 = vmul.f32 %v289, %v332
      %v370 = vmul.f32 %v290, %v334
      %v371 = vmul.f32 %v291, %v336
      %v372 = vmul.f32 %v292, %v338
      %v373 = vmul.f32 %v293, %v340
      %v374 = vmul.f32 %v294, %v342
      %v376 = vrot.slane %v214, 6
      %v378 = vsub.f32 %v214, %v376
      %v380 = vrot.slane %v378, 1
      %v382 = vmul.f32 %v378, %v380
      %383 = vset.pattern.permute.xlu0 2
      %384 = vperm.xlu0 %383, %v198
      %v385 = vpop.permute.xlu0 %384
      %387 = vset.pattern.permute.xlu0 2
      %388 = vperm.xlu0 %387, %v199
      %v389 = vpop.permute.xlu0 %388
      %391 = vset.pattern.permute.xlu0 2
      %392 = vperm.xlu0 %391, %v200
      %v393 = vpop.permute.xlu0 %392
      %395 = vset.pattern.permute.xlu0 2
      %396 = vperm.xlu0 %395, %v201
      %v397 = vpop.permute.xlu0 %396
      %399 = vset.pattern.permute.xlu0 2
      %400 = vperm.xlu0 %399, %v202
      %v401 = vpop.permute.xlu0 %400
      %403 = vset.pattern.permute.xlu0 2
      %404 = vperm.xlu0 %403, %v203
      %v405 = vpop.permute.xlu0 %404
      %407 = vset.pattern.permute.xlu0 2
      %408 = vperm.xlu0 %407, %v204
      %v409 = vpop.permute.xlu0 %408
      %411 = vset.pattern.permute.xlu0 2
      %412 = vperm.xlu0 %411, %v205
      %v413 = vpop.permute.xlu0 %412
      %415 = vset.pattern.permute.xlu0 2
      %416 = vperm.xlu0 %415, %v206
      %v417 = vpop.permute.xlu0 %416
      %419 = vset.pattern.permute.xlu0 2
      %420 = vperm.xlu0 %419, %v207
      %v421 = vpop.permute.xlu0 %420
      %423 = vset.pattern.permute.xlu0 2
      %424 = vperm.xlu0 %423, %v208
      %v425 = vpop.permute.xlu0 %424
      %427 = vset.pattern.permute.xlu0 2
      %428 = vperm.xlu0 %427, %v209
      %v429 = vpop.permute.xlu0 %428
      %431 = vset.pattern.permute.xlu0 2
      %432 = vperm.xlu0 %431, %v210
      %v433 = vpop.permute.xlu0 %432
      %435 = vset.pattern.permute.xlu0 2
      %436 = vperm.xlu0 %435, %v211
      %v437 = vpop.permute.xlu0 %436
      %439 = vset.pattern.permute.xlu0 2
      %440 = vperm.xlu0 %439, %v212
      %v441 = vpop.permute.xlu0 %440
      %443 = vset.pattern.permute.xlu0 2
      %444 = vperm.xlu0 %443, %v213
      %v445 = vpop.permute.xlu0 %444
      %v447 = vlaneseq
      %v448 = vshrl.u32 %v447, 7
      %v449 = vsub.s32 2, %v448
      %v450 = vrot.slane %v214, %v449
      %v451 = vmin.f32 %v385, %v450
      %v452 = vmin.f32 %v389, %v450
      %v453 = vmin.f32 %v393, %v450
      %v454 = vmin.f32 %v397, %v450
      %v455 = vmin.f32 %v401, %v450
      %v456 = vmin.f32 %v405, %v450
      %v457 = vmin.f32 %v409, %v450
      %v458 = vmin.f32 %v413, %v450
      %v459 = vmin.f32 %v417, %v450
      %v460 = vmin.f32 %v421, %v450
      %v461 = vmin.f32 %v425, %v450
      %v462 = vmin.f32 %v429, %v450
      %v463 = vmin.f32 %v433, %v450
      %v464 = vmin.f32 %v437, %v450
      %v465 = vmin.f32 %v441, %v450
      %v466 = vmin.f32 %v445, %v450
      %467 = vset.pattern.permute.xlu0 0
      %468 = vperm.xlu0 %467, %v198
      %v469 = vpop.permute.xlu0 %468
      %471 = vset.pattern.permute.xlu0 0
      %472 = vperm.xlu0 %471, %v199
      %v473 = vpop.permute.xlu0 %472
      %475 = vset.pattern.permute.xlu0 0
      %476 = vperm.xlu0 %475, %v200
      %v477 = vpop.permute.xlu0 %476
      %479 = vset.pattern.permute.xlu0 0
      %480 = vperm.xlu0 %479, %v201
      %v481 = vpop.permute.xlu0 %480
      %483 = vset.pattern.permute.xlu0 0
      %484 = vperm.xlu0 %483, %v202
      %v485 = vpop.permute.xlu0 %484
      %487 = vset.pattern.permute.xlu0 0
      %488 = vperm.xlu0 %487, %v203
      %v489 = vpop.permute.xlu0 %488
      %491 = vset.pattern.permute.xlu0 0
      %492 = vperm.xlu0 %491, %v204
      %v493 = vpop.permute.xlu0 %492
      %495 = vset.pattern.permute.xlu0 0
      %496 = vperm.xlu0 %495, %v205
      %v497 = vpop.permute.xlu0 %496
      %499 = vset.pattern.permute.xlu0 0
      %500 = vperm.xlu0 %499, %v206
      %v501 = vpop.permute.xlu0 %500
      %503 = vset.pattern.permute.xlu0 0
      %504 = vperm.xlu0 %503, %v207
      %v505 = vpop.permute.xlu0 %504
      %507 = vset.pattern.permute.xlu0 0
      %508 = vperm.xlu0 %507, %v208
      %v509 = vpop.permute.xlu0 %508
      %511 = vset.pattern.permute.xlu0 0
      %512 = vperm.xlu0 %511, %v209
      %v513 = vpop.permute.xlu0 %512
      %515 = vset.pattern.permute.xlu0 0
      %516 = vperm.xlu0 %515, %v210
      %v517 = vpop.permute.xlu0 %516
      %519 = vset.pattern.permute.xlu0 0
      %520 = vperm.xlu0 %519, %v211
      %v521 = vpop.permute.xlu0 %520
      %523 = vset.pattern.permute.xlu0 0
      %524 = vperm.xlu0 %523, %v212
      %v525 = vpop.permute.xlu0 %524
      %527 = vset.pattern.permute.xlu0 0
      %528 = vperm.xlu0 %527, %v213
      %v529 = vpop.permute.xlu0 %528
      %v531 = vlaneseq
      %v532 = vshrl.u32 %v531, 7
      %v533 = vsub.s32 0, %v532
      %v534 = vrot.slane %v214, %v533
      %v535 = vmax.f32 %v469, %v534
      %v536 = vmax.f32 %v473, %v534
      %v537 = vmax.f32 %v477, %v534
      %v538 = vmax.f32 %v481, %v534
      %v539 = vmax.f32 %v485, %v534
      %v540 = vmax.f32 %v489, %v534
      %v541 = vmax.f32 %v493, %v534
      %v542 = vmax.f32 %v497, %v534
      %v543 = vmax.f32 %v501, %v534
      %v544 = vmax.f32 %v505, %v534
      %v545 = vmax.f32 %v509, %v534
      %v546 = vmax.f32 %v513, %v534
      %v547 = vmax.f32 %v517, %v534
      %v548 = vmax.f32 %v521, %v534
      %v549 = vmax.f32 %v525, %v534
      %v550 = vmax.f32 %v529, %v534
      %v551 = vsub.f32 %v451, %v535
      %v552 = vsub.f32 %v452, %v536
      %v553 = vsub.f32 %v453, %v537
      %v554 = vsub.f32 %v454, %v538
      %v555 = vsub.f32 %v455, %v539
      %v556 = vsub.f32 %v456, %v540
      %v557 = vsub.f32 %v457, %v541
      %v558 = vsub.f32 %v458, %v542
      %v559 = vsub.f32 %v459, %v543
      %v560 = vsub.f32 %v460, %v544
      %v561 = vsub.f32 %v461, %v545
      %v562 = vsub.f32 %v462, %v546
      %v563 = vsub.f32 %v463, %v547
      %v564 = vsub.f32 %v464, %v548
      %v565 = vsub.f32 %v465, %v549
      %v566 = vsub.f32 %v466, %v550
      %v567 = vmax.f32 %v551, 0.0
      %v568 = vmax.f32 %v552, 0.0
      %v569 = vmax.f32 %v553, 0.0
      %v570 = vmax.f32 %v554, 0.0
      %v571 = vmax.f32 %v555, 0.0
      %v572 = vmax.f32 %v556, 0.0
      %v573 = vmax.f32 %v557, 0.0
      %v574 = vmax.f32 %v558, 0.0
      %v575 = vmax.f32 %v559, 0.0
      %v576 = vmax.f32 %v560, 0.0
      %v577 = vmax.f32 %v561, 0.0
      %v578 = vmax.f32 %v562, 0.0
      %v579 = vmax.f32 %v563, 0.0
      %v580 = vmax.f32 %v564, 0.0
      %v581 = vmax.f32 %v565, 0.0
      %v582 = vmax.f32 %v566, 0.0
      %583 = vset.pattern.permute.xlu0 3
      %584 = vperm.xlu0 %583, %v198
      %v585 = vpop.permute.xlu0 %584
      %587 = vset.pattern.permute.xlu0 3
      %588 = vperm.xlu0 %587, %v199
      %v589 = vpop.permute.xlu0 %588
      %591 = vset.pattern.permute.xlu0 3
      %592 = vperm.xlu0 %591, %v200
      %v593 = vpop.permute.xlu0 %592
      %595 = vset.pattern.permute.xlu0 3
      %596 = vperm.xlu0 %595, %v201
      %v597 = vpop.permute.xlu0 %596
      %599 = vset.pattern.permute.xlu0 3
      %600 = vperm.xlu0 %599, %v202
      %v601 = vpop.permute.xlu0 %600
      %603 = vset.pattern.permute.xlu0 3
      %604 = vperm.xlu0 %603, %v203
      %v605 = vpop.permute.xlu0 %604
      %607 = vset.pattern.permute.xlu0 3
      %608 = vperm.xlu0 %607, %v204
      %v609 = vpop.permute.xlu0 %608
      %611 = vset.pattern.permute.xlu0 3
      %612 = vperm.xlu0 %611, %v205
      %v613 = vpop.permute.xlu0 %612
      %615 = vset.pattern.permute.xlu0 3
      %616 = vperm.xlu0 %615, %v206
      %v617 = vpop.permute.xlu0 %616
      %619 = vset.pattern.permute.xlu0 3
      %620 = vperm.xlu0 %619, %v207
      %v621 = vpop.permute.xlu0 %620
      %623 = vset.pattern.permute.xlu0 3
      %624 = vperm.xlu0 %623, %v208
      %v625 = vpop.permute.xlu0 %624
      %627 = vset.pattern.permute.xlu0 3
      %628 = vperm.xlu0 %627, %v209
      %v629 = vpop.permute.xlu0 %628
      %631 = vset.pattern.permute.xlu0 3
      %632 = vperm.xlu0 %631, %v210
      %v633 = vpop.permute.xlu0 %632
      %635 = vset.pattern.permute.xlu0 3
      %636 = vperm.xlu0 %635, %v211
      %v637 = vpop.permute.xlu0 %636
      %639 = vset.pattern.permute.xlu0 3
      %640 = vperm.xlu0 %639, %v212
      %v641 = vpop.permute.xlu0 %640
      %643 = vset.pattern.permute.xlu0 3
      %644 = vperm.xlu0 %643, %v213
      %v645 = vpop.permute.xlu0 %644
      %v647 = vlaneseq
      %v648 = vshrl.u32 %v647, 7
      %v649 = vsub.s32 3, %v648
      %v650 = vrot.slane %v214, %v649
      %v651 = vmin.f32 %v585, %v650
      %v652 = vmin.f32 %v589, %v650
      %v653 = vmin.f32 %v593, %v650
      %v654 = vmin.f32 %v597, %v650
      %v655 = vmin.f32 %v601, %v650
      %v656 = vmin.f32 %v605, %v650
      %v657 = vmin.f32 %v609, %v650
      %v658 = vmin.f32 %v613, %v650
      %v659 = vmin.f32 %v617, %v650
      %v660 = vmin.f32 %v621, %v650
      %v661 = vmin.f32 %v625, %v650
      %v662 = vmin.f32 %v629, %v650
      %v663 = vmin.f32 %v633, %v650
      %v664 = vmin.f32 %v637, %v650
      %v665 = vmin.f32 %v641, %v650
      %v666 = vmin.f32 %v645, %v650
      %667 = vset.pattern.permute.xlu0 1
      %668 = vperm.xlu0 %667, %v198
      %v669 = vpop.permute.xlu0 %668
      %671 = vset.pattern.permute.xlu0 1
      %672 = vperm.xlu0 %671, %v199
      %v673 = vpop.permute.xlu0 %672
      %675 = vset.pattern.permute.xlu0 1
      %676 = vperm.xlu0 %675, %v200
      %v677 = vpop.permute.xlu0 %676
      %679 = vset.pattern.permute.xlu0 1
      %680 = vperm.xlu0 %679, %v201
      %v681 = vpop.permute.xlu0 %680
      %683 = vset.pattern.permute.xlu0 1
      %684 = vperm.xlu0 %683, %v202
      %v685 = vpop.permute.xlu0 %684
      %687 = vset.pattern.permute.xlu0 1
      %688 = vperm.xlu0 %687, %v203
      %v689 = vpop.permute.xlu0 %688
      %691 = vset.pattern.permute.xlu0 1
      %692 = vperm.xlu0 %691, %v204
      %v693 = vpop.permute.xlu0 %692
      %695 = vset.pattern.permute.xlu0 1
      %696 = vperm.xlu0 %695, %v205
      %v697 = vpop.permute.xlu0 %696
      %699 = vset.pattern.permute.xlu0 1
      %700 = vperm.xlu0 %699, %v206
      %v701 = vpop.permute.xlu0 %700
      %703 = vset.pattern.permute.xlu0 1
      %704 = vperm.xlu0 %703, %v207
      %v705 = vpop.permute.xlu0 %704
      %707 = vset.pattern.permute.xlu0 1
      %708 = vperm.xlu0 %707, %v208
      %v709 = vpop.permute.xlu0 %708
      %711 = vset.pattern.permute.xlu0 1
      %712 = vperm.xlu0 %711, %v209
      %v713 = vpop.permute.xlu0 %712
      %715 = vset.pattern.permute.xlu0 1
      %716 = vperm.xlu0 %715, %v210
      %v717 = vpop.permute.xlu0 %716
      %719 = vset.pattern.permute.xlu0 1
      %720 = vperm.xlu0 %719, %v211
      %v721 = vpop.permute.xlu0 %720
      %723 = vset.pattern.permute.xlu0 1
      %724 = vperm.xlu0 %723, %v212
      %v725 = vpop.permute.xlu0 %724
      %727 = vset.pattern.permute.xlu0 1
      %728 = vperm.xlu0 %727, %v213
      %v729 = vpop.permute.xlu0 %728
      %v731 = vlaneseq
      %v732 = vshrl.u32 %v731, 7
      %v733 = vsub.s32 1, %v732
      %v734 = vrot.slane %v214, %v733
      %v735 = vmax.f32 %v669, %v734
      %v736 = vmax.f32 %v673, %v734
      %v737 = vmax.f32 %v677, %v734
      %v738 = vmax.f32 %v681, %v734
      %v739 = vmax.f32 %v685, %v734
      %v740 = vmax.f32 %v689, %v734
      %v741 = vmax.f32 %v693, %v734
      %v742 = vmax.f32 %v697, %v734
      %v743 = vmax.f32 %v701, %v734
      %v744 = vmax.f32 %v705, %v734
      %v745 = vmax.f32 %v709, %v734
      %v746 = vmax.f32 %v713, %v734
      %v747 = vmax.f32 %v717, %v734
      %v748 = vmax.f32 %v721, %v734
      %v749 = vmax.f32 %v725, %v734
      %v750 = vmax.f32 %v729, %v734
      %v751 = vsub.f32 %v651, %v735
      %v752 = vsub.f32 %v652, %v736
      %v753 = vsub.f32 %v653, %v737
      %v754 = vsub.f32 %v654, %v738
      %v755 = vsub.f32 %v655, %v739
      %v756 = vsub.f32 %v656, %v740
      %v757 = vsub.f32 %v657, %v741
      %v758 = vsub.f32 %v658, %v742
      %v759 = vsub.f32 %v659, %v743
      %v760 = vsub.f32 %v660, %v744
      %v761 = vsub.f32 %v661, %v745
      %v762 = vsub.f32 %v662, %v746
      %v763 = vsub.f32 %v663, %v747
      %v764 = vsub.f32 %v664, %v748
      %v765 = vsub.f32 %v665, %v749
      %v766 = vsub.f32 %v666, %v750
      %v767 = vmax.f32 %v751, 0.0
      %v768 = vmax.f32 %v752, 0.0
      %v769 = vmax.f32 %v753, 0.0
      %v770 = vmax.f32 %v754, 0.0
      %v771 = vmax.f32 %v755, 0.0
      %v772 = vmax.f32 %v756, 0.0
      %v773 = vmax.f32 %v757, 0.0
      %v774 = vmax.f32 %v758, 0.0
      %v775 = vmax.f32 %v759, 0.0
      %v776 = vmax.f32 %v760, 0.0
      %v777 = vmax.f32 %v761, 0.0
      %v778 = vmax.f32 %v762, 0.0
      %v779 = vmax.f32 %v763, 0.0
      %v780 = vmax.f32 %v764, 0.0
      %v781 = vmax.f32 %v765, 0.0
      %v782 = vmax.f32 %v766, 0.0
      %v783 = vmul.f32 %v567, %v767
      %v784 = vmul.f32 %v568, %v768
      %v785 = vmul.f32 %v569, %v769
      %v786 = vmul.f32 %v570, %v770
      %v787 = vmul.f32 %v571, %v771
      %v788 = vmul.f32 %v572, %v772
      %v789 = vmul.f32 %v573, %v773
      %v790 = vmul.f32 %v574, %v774
      %v791 = vmul.f32 %v575, %v775
      %v792 = vmul.f32 %v576, %v776
      %v793 = vmul.f32 %v577, %v777
      %v794 = vmul.f32 %v578, %v778
      %v795 = vmul.f32 %v579, %v779
      %v796 = vmul.f32 %v580, %v780
      %v797 = vmul.f32 %v581, %v781
      %v798 = vmul.f32 %v582, %v782
      %800 = vset.pattern.permute.xlu0 2
      %801 = vperm.xlu0 %800, %v359
      %v802 = vpop.permute.xlu0 %801
      %805 = vset.pattern.permute.xlu0 2
      %806 = vperm.xlu0 %805, %v360
      %v807 = vpop.permute.xlu0 %806
      %810 = vset.pattern.permute.xlu0 2
      %811 = vperm.xlu0 %810, %v361
      %v812 = vpop.permute.xlu0 %811
      %815 = vset.pattern.permute.xlu0 2
      %816 = vperm.xlu0 %815, %v362
      %v817 = vpop.permute.xlu0 %816
      %820 = vset.pattern.permute.xlu0 2
      %821 = vperm.xlu0 %820, %v363
      %v822 = vpop.permute.xlu0 %821
      %825 = vset.pattern.permute.xlu0 2
      %826 = vperm.xlu0 %825, %v364
      %v827 = vpop.permute.xlu0 %826
      %830 = vset.pattern.permute.xlu0 2
      %831 = vperm.xlu0 %830, %v365
      %v832 = vpop.permute.xlu0 %831
      %835 = vset.pattern.permute.xlu0 2
      %836 = vperm.xlu0 %835, %v366
      %v837 = vpop.permute.xlu0 %836
      %840 = vset.pattern.permute.xlu0 2
      %841 = vperm.xlu0 %840, %v367
      %v842 = vpop.permute.xlu0 %841
      %845 = vset.pattern.permute.xlu0 2
      %846 = vperm.xlu0 %845, %v368
      %v847 = vpop.permute.xlu0 %846
      %850 = vset.pattern.permute.xlu0 2
      %851 = vperm.xlu0 %850, %v369
      %v852 = vpop.permute.xlu0 %851
      %855 = vset.pattern.permute.xlu0 2
      %856 = vperm.xlu0 %855, %v370
      %v857 = vpop.permute.xlu0 %856
      %860 = vset.pattern.permute.xlu0 2
      %861 = vperm.xlu0 %860, %v371
      %v862 = vpop.permute.xlu0 %861
      %865 = vset.pattern.permute.xlu0 2
      %866 = vperm.xlu0 %865, %v372
      %v867 = vpop.permute.xlu0 %866
      %870 = vset.pattern.permute.xlu0 2
      %871 = vperm.xlu0 %870, %v373
      %v872 = vpop.permute.xlu0 %871
      %875 = vset.pattern.permute.xlu0 2
      %876 = vperm.xlu0 %875, %v374
      %v877 = vpop.permute.xlu0 %876
      %v879 = vlaneseq
      %v880 = vshrl.u32 %v879, 7
      %v881 = vsub.s32 2, %v880
      %v882 = vrot.slane %v382, %v881
      %v883 = vadd.f32 %v802, %v882
      %v884 = vadd.f32 %v807, %v882
      %v885 = vadd.f32 %v812, %v882
      %v886 = vadd.f32 %v817, %v882
      %v887 = vadd.f32 %v822, %v882
      %v888 = vadd.f32 %v827, %v882
      %v889 = vadd.f32 %v832, %v882
      %v890 = vadd.f32 %v837, %v882
      %v891 = vadd.f32 %v842, %v882
      %v892 = vadd.f32 %v847, %v882
      %v893 = vadd.f32 %v852, %v882
      %v894 = vadd.f32 %v857, %v882
      %v895 = vadd.f32 %v862, %v882
      %v896 = vadd.f32 %v867, %v882
      %v897 = vadd.f32 %v872, %v882
      %v898 = vadd.f32 %v877, %v882
      %v899 = vsub.f32 %v883, %v783
      %v900 = vsub.f32 %v884, %v784
      %v901 = vsub.f32 %v885, %v785
      %v902 = vsub.f32 %v886, %v786
      %v903 = vsub.f32 %v887, %v787
      %v904 = vsub.f32 %v888, %v788
      %v905 = vsub.f32 %v889, %v789
      %v906 = vsub.f32 %v890, %v790
      %v907 = vsub.f32 %v891, %v791
      %v908 = vsub.f32 %v892, %v792
      %v909 = vsub.f32 %v893, %v793
      %v910 = vsub.f32 %v894, %v794
      %v911 = vsub.f32 %v895, %v795
      %v912 = vsub.f32 %v896, %v796
      %v913 = vsub.f32 %v897, %v797
      %v914 = vsub.f32 %v898, %v798
      %v915 = vadd.f32 %v899, 1e-07
      %v916 = vadd.f32 %v900, 1e-07
      %v917 = vadd.f32 %v901, 1e-07
      %v918 = vadd.f32 %v902, 1e-07
      %v919 = vadd.f32 %v903, 1e-07
      %v920 = vadd.f32 %v904, 1e-07
      %v921 = vadd.f32 %v905, 1e-07
      %v922 = vadd.f32 %v906, 1e-07
      %v923 = vadd.f32 %v907, 1e-07
      %v924 = vadd.f32 %v908, 1e-07
      %v925 = vadd.f32 %v909, 1e-07
      %v926 = vadd.f32 %v910, 1e-07
      %v927 = vadd.f32 %v911, 1e-07
      %v928 = vadd.f32 %v912, 1e-07
      %v929 = vadd.f32 %v913, 1e-07
      %v930 = vadd.f32 %v914, 1e-07
      %v931 = vmul.f32 %v915, 0.45
      %v932 = vmul.f32 %v916, 0.45
      %v933 = vmul.f32 %v917, 0.45
      %v934 = vmul.f32 %v918, 0.45
      %v935 = vmul.f32 %v919, 0.45
      %v936 = vmul.f32 %v920, 0.45
      %v937 = vmul.f32 %v921, 0.45
      %v938 = vmul.f32 %v922, 0.45
      %v939 = vmul.f32 %v923, 0.45
      %v940 = vmul.f32 %v924, 0.45
      %v941 = vmul.f32 %v925, 0.45
      %v942 = vmul.f32 %v926, 0.45
      %v943 = vmul.f32 %v927, 0.45
      %v944 = vmul.f32 %v928, 0.45
      %v945 = vmul.f32 %v929, 0.45
      %v946 = vmul.f32 %v930, 0.45
      %vm947 = vcmp.gt.f32.partialorder %v783, %v931
      %vm948 = vcmp.gt.f32.partialorder %v784, %v932
      %vm949 = vcmp.gt.f32.partialorder %v785, %v933
      %vm950 = vcmp.gt.f32.partialorder %v786, %v934
      %vm951 = vcmp.gt.f32.partialorder %v787, %v935
      %vm952 = vcmp.gt.f32.partialorder %v788, %v936
      %vm953 = vcmp.gt.f32.partialorder %v789, %v937
      %vm954 = vcmp.gt.f32.partialorder %v790, %v938
      %vm955 = vcmp.gt.f32.partialorder %v791, %v939
      %vm956 = vcmp.gt.f32.partialorder %v792, %v940
      %vm957 = vcmp.gt.f32.partialorder %v793, %v941
      %vm958 = vcmp.gt.f32.partialorder %v794, %v942
      %vm959 = vcmp.gt.f32.partialorder %v795, %v943
      %vm960 = vcmp.gt.f32.partialorder %v796, %v944
      %vm961 = vcmp.gt.f32.partialorder %v797, %v945
      %vm962 = vcmp.gt.f32.partialorder %v798, %v946
      %v963 = vsel %vm947, 1, 0
      %v964 = vsel %vm948, 1, 0
      %v965 = vsel %vm949, 1, 0
      %v966 = vsel %vm950, 1, 0
      %v967 = vsel %vm951, 1, 0
      %v968 = vsel %vm952, 1, 0
      %v969 = vsel %vm953, 1, 0
      %v970 = vsel %vm954, 1, 0
      %v971 = vsel %vm955, 1, 0
      %v972 = vsel %vm956, 1, 0
      %v973 = vsel %vm957, 1, 0
      %v974 = vsel %vm958, 1, 0
      %v975 = vsel %vm959, 1, 0
      %v976 = vsel %vm960, 1, 0
      %v977 = vsel %vm961, 1, 0
      %v978 = vsel %vm962, 1, 0
      %v979 = vcvt.s32.f32 %v963
      %v980 = vcvt.s32.f32 %v964
      %v981 = vcvt.s32.f32 %v965
      %v982 = vcvt.s32.f32 %v966
      %v983 = vcvt.s32.f32 %v967
      %v984 = vcvt.s32.f32 %v968
      %v985 = vcvt.s32.f32 %v969
      %v986 = vcvt.s32.f32 %v970
      %v987 = vcvt.s32.f32 %v971
      %v988 = vcvt.s32.f32 %v972
      %v989 = vcvt.s32.f32 %v973
      %v990 = vcvt.s32.f32 %v974
      %v991 = vcvt.s32.f32 %v975
      %v992 = vcvt.s32.f32 %v976
      %v993 = vcvt.s32.f32 %v977
      %v994 = vcvt.s32.f32 %v978
      %995 = vst [vmem:[#allocation2] sm:$0xff] %v979
      %996 = vst [vmem:[#allocation2 + $0x8] sm:$0xff] %v980
      %997 = vst [vmem:[#allocation2 + $0x10] sm:$0xff] %v981
      %998 = vst [vmem:[#allocation2 + $0x18] sm:$0xff] %v982
      %999 = vst [vmem:[#allocation2 + $0x20] sm:$0xff] %v983
      %1000 = vst [vmem:[#allocation2 + $0x28] sm:$0xff] %v984
      %1001 = vst [vmem:[#allocation2 + $0x30] sm:$0xff] %v985
      %1002 = vst [vmem:[#allocation2 + $0x38] sm:$0xff] %v986
      %1003 = vst [vmem:[#allocation2 + $0x40] sm:$0xff] %v987
      %1004 = vst [vmem:[#allocation2 + $0x48] sm:$0xff] %v988
      %1005 = vst [vmem:[#allocation2 + $0x50] sm:$0xff] %v989
      %1006 = vst [vmem:[#allocation2 + $0x58] sm:$0xff] %v990
      %1007 = vst [vmem:[#allocation2 + $0x60] sm:$0xff] %v991
      %1008 = vst [vmem:[#allocation2 + $0x68] sm:$0xff] %v992
      %1009 = vst [vmem:[#allocation2 + $0x70] sm:$0xff] %v993
      %1010 = vst [vmem:[#allocation2 + $0x78] sm:$0xff] %v994
      %v1011 = vld [vmem:[%s194] sm:$0x1]
      %v1012 = vlaneseq
      %v1013 = vand.u32 %v1012, 127
      loop: start=0, step=1, limit=128
      $region33: #{autoshape_forward.4} parent=31 // loop_pre_header
        _
      $region34: #{autoshape_forward.4} parent=31 // loop_header
        %s1015 = sphi 0, %s1019
        %p1016 = scmp.ge.s32.totalorder %s1015, 128
        %v1020 = vphi %v1011, %v1044
      $region35: #{autoshape_forward.4} parent=31 // loop_header_branch
        %1018 = sbr.rel (%p1016) target = $region39
      $region36: #{autoshape_forward.4} parent=31 // loop_body
        %s1021 = scalar_lea.vmem [#allocation2], %s1015
        %v1022 = vld [vmem:[%s1021] sm:$0x1]
        %v1023 = vstv %s1015
        %vm1024 = vcmp.lt.s32.totalorder %v1013, %v1023
        %v1025 = vmul.f32 %v1020, %v1022
        %v1026 = vsel %vm1024, %v1025, 0.0
        %vm1027 = vcmask 1040384
        %v1028 = vsel %vm1027, %v1026, 0.0
        %1029 = vadd.xlane.f32.xlu0 %v1028
        %v1030 = vpop.xlane.xlu0 %1029
        %v1031 = vrot.slane %v1030, 4
        %v1032 = vadd.f32 %v1030, %v1031
        %v1033 = vrot.slane %v1032, 2
        %v1034 = vadd.f32 %v1032, %v1033
        %v1035 = vrot.slane %v1034, 1
        %v1036 = vadd.f32 %v1034, %v1035
        %s1037 = vtos %v1036
        %p1038 = scmp.gt.f32.partialorder %s1037, 0.0
        %vm1039 = vcmp.eq.s32.totalorder %v1013, %v1023
        %s1040 = scalar_select %p1038, 1, 0
        %v1041 = vstv %s1040
        %vm1042 = vcmp.eq.s32.totalorder %v1041, 1
        %v1043 = vsel %vm1042, 0.0, %v1020
        %v1044 = vsel %vm1039, %v1043, %v1020
      $region37: #{autoshape_forward.4} parent=31 // loop_footer
        %s1019 = sadd.s32 1, %s1015
      $region38: #{autoshape_forward.4} parent=31 // loop_footer_branch
        %1014 = sbr.rel target = $region34
      $region39: #{autoshape_forward.4} parent=31 // loop_exit
        _
      %1045 = vst [vmem:[%s197] sm:$0x1] %v1020
      %p1046 = scmp.lt.s32.totalorder %s14, 1
      %s1047 = scalar_select %p1046, %s14, 1
      %s1048 = scalar_lea.vmem %s3, %s1047
      // Predicated region
      $region40: #{autoshape_forward.4} parent=31 // pred_check
        %p1049 = pneg %p110
      $region41: #{autoshape_forward.4} parent=31 // pred_check_branch
        %1051 = sbr.rel (%p1049) target = $region43
      $region42: #{autoshape_forward.4} parent=31 // pred_region
        _
      $region43: #{autoshape_forward.4} parent=31 // pred_fallthru
        _
    $region32: #{autoshape_forward.4} parent=5 // pred_fallthru
      _
    %p1052 = scmp.le.s32.totalorder 2, %s9
    // Predicated region
    $region44: #{autoshape_forward.4} parent=5 // pred_check
      %p1053 = pneg %p1052
    $region45: #{autoshape_forward.4} parent=5 // pred_check_branch
      %1055 = sbr.rel (%p1053) target = $region47
    $region46: #{autoshape_forward.4} parent=5 // pred_region
      %s1056 = ssub.s32 %s9, 2
      // Predicated region
      $region48: #{autoshape_forward.4} parent=46 // pred_check
        %p1057 = pneg %p116
      $region49: #{autoshape_forward.4} parent=46 // pred_check_branch
        %1059 = sbr.rel (%p1057) target = $region51
      $region50: #{autoshape_forward.4} parent=46 // pred_region
        %p1060 = scmp.lt.s32.totalorder %s15, 1
        %s1061 = scalar_select %p1060, %s15, 1
        %s1062 = scalar_lea.vmem %s3, %s1061
      $region51: #{autoshape_forward.4} parent=46 // pred_fallthru
        _
    $region47: #{autoshape_forward.4} parent=5 // pred_fallthru
      _
  $region6: #{autoshape_forward.4} parent=0 // loop_footer
    %s13 = sadd.s32 1, %s9
  $region7: #{autoshape_forward.4} parent=0 // loop_footer_branch
    %8 = sbr.rel target = $region3
  $region8: #{autoshape_forward.4} parent=0 // loop_exit
    _

// kernel: autoshape_forward.5
$region0: #{autoshape_forward.5}
  #allocation0 [shape = 'u32[]', space=smem, size = 0x4, offset = 0x4, fixed_abs, tag = 'smem constant byte address 0x4 - core index']
  #allocation1 [shape = 'u32[144,128]{1,0:T(1,128)}', space=vmem, size = 0x12000, scoped, tag = 'internal scratch']
  %s0 = inlined_call_operand.vmem [shape: f32[6,128], index: 0, kind: input, shape index: {}]
  %s1 = inlined_call_operand.vmem [shape: f32[6,1], index: 1, kind: input, shape index: {}]
  %s2 = inlined_call_operand.vmem [shape: f32[6,1], index: 2, kind: input, shape index: {}]
  %s3 = inlined_call_operand.vmem [shape: f32[6,128], index: 3, kind: output, shape index: {0}]
  %s4 = inlined_call_operand.vmem [shape: f32[6,128], index: 4, kind: output, shape index: {1}]
  %s5 = inlined_call_operand.vmem [shape: f32[6,128], index: 5, kind: output, shape index: {2}]
  %s6 = inlined_call_operand.vmem [shape: f32[6,128], index: 6, kind: output, shape index: {3}]
  %7 = xla_tuple %s3, %s4, %s5, %s6
  %s8 = sld [smem:[#allocation0]]
  $region46: #{autoshape_forward.5} parent=0
    _
  %s10 = ssub.s32 1, %s8
  %s11 = scalar_select 0, %s10, %s8
  // Predicated region
  $region2: #{autoshape_forward.5} parent=0 // pred_check
    _
  $region3: #{autoshape_forward.5} parent=0 // pred_check_branch
    %13 = sbr.rel (0) target = $region5
  $region4: #{autoshape_forward.5} parent=0 // pred_region
    _
  $region5: #{autoshape_forward.5} parent=0 // pred_fallthru
    _
  // Predicated region
  $region6: #{autoshape_forward.5} parent=0 // pred_check
    _
  $region7: #{autoshape_forward.5} parent=0 // pred_check_branch
    %15 = sbr.rel (0) target = $region9
  $region8: #{autoshape_forward.5} parent=0 // pred_region
    _
  $region9: #{autoshape_forward.5} parent=0 // pred_fallthru
    _
  // Predicated region
  $region10: #{autoshape_forward.5} parent=0 // pred_check
    _
  $region11: #{autoshape_forward.5} parent=0 // pred_check_branch
    %17 = sbr.rel (0) target = $region13
  $region12: #{autoshape_forward.5} parent=0 // pred_region
    _
  $region13: #{autoshape_forward.5} parent=0 // pred_fallthru
    _
  %v18 = vld [vmem:[%s0] sm:$0x3f]
  %v19 = vld [vmem:[%s1] sm:$0x3f]
  %v20 = vld [vmem:[%s2] sm:$0x3f]
  %v21 = vlaneseq
  %v22 = vshrl.u32 %v21, 7
  %vm23 = vcmp.lt.s32.totalorder %v22, 4
  %v24 = vmax.f32 %v18, 0.0
  %26 = vset.pattern.permute.xlu0 0
  %27 = vperm.xlu0 %26, %v19
  %v28 = vpop.permute.xlu0 %27
  %v30 = vmin.f32 %v28, %v24
  %v31 = vsel %vm23, %v30, %v18
  %v33 = vrot.slane %v31, 2
  %v35 = vadd.f32 %v31, %v33
  %v36 = vmul.f32 %v35, 0.5
  %v37 = vrot.slane %v31, 6
  %v39 = vsub.f32 %v31, %v37
  %vm40 = vcmask 1041408
  %v41 = vsel %vm40, %v36, %v39
  %vm42 = vcmask 1042432
  %v43 = vsel %vm42, %v41, %v39
  %vm44 = vcmask 1043456
  %v45 = vsel %vm44, %v43, %v31
  %46 = vst [vmem:[%s3] sm:$0x3f] %v31
  %47 = vst [vmem:[%s4] sm:$0x3f] %v45
  %49 = vset.pattern.permute.xlu0 0
  %50 = vperm.xlu0 %49, %v20
  %v51 = vpop.permute.xlu0 %50
  %v53 = vmul.f32 %v31, %v51
  %54 = vst [vmem:[%s5] sm:$0x3f] %v53
  %v55 = vmul.f32 %v45, %v51
  %56 = vst [vmem:[%s6] sm:$0x3f] %v55
  // Predicated region
  $region14: #{autoshape_forward.5} parent=0 // pred_check
    _
  $region15: #{autoshape_forward.5} parent=0 // pred_check_branch
    %58 = sbr.rel (0) target = $region17
  $region16: #{autoshape_forward.5} parent=0 // pred_region
    _
  $region17: #{autoshape_forward.5} parent=0 // pred_fallthru
    _
  // Predicated region
  $region18: #{autoshape_forward.5} parent=0 // pred_check
    _
  $region19: #{autoshape_forward.5} parent=0 // pred_check_branch
    %60 = sbr.rel (0) target = $region21
  $region20: #{autoshape_forward.5} parent=0 // pred_region
    _
  $region21: #{autoshape_forward.5} parent=0 // pred_fallthru
    _
  // Predicated region
  $region22: #{autoshape_forward.5} parent=0 // pred_check
    _
  $region23: #{autoshape_forward.5} parent=0 // pred_check_branch
    %62 = sbr.rel (0) target = $region25
  $region24: #{autoshape_forward.5} parent=0 // pred_region
    _
  $region25: #{autoshape_forward.5} parent=0 // pred_fallthru
    _
  // Predicated region
  $region26: #{autoshape_forward.5} parent=0 // pred_check
    _
  $region27: #{autoshape_forward.5} parent=0 // pred_check_branch
    %64 = sbr.rel (0) target = $region29
  $region28: #{autoshape_forward.5} parent=0 // pred_region
    _
  $region29: #{autoshape_forward.5} parent=0 // pred_fallthru
    _
  // Predicated region
  $region30: #{autoshape_forward.5} parent=0 // pred_check
    _
  $region31: #{autoshape_forward.5} parent=0 // pred_check_branch
    %66 = sbr.rel (0) target = $region33
  $region32: #{autoshape_forward.5} parent=0 // pred_region
    _
  $region33: #{autoshape_forward.5} parent=0 // pred_fallthru
    _
  // Predicated region
  $region34: #{autoshape_forward.5} parent=0 // pred_check
    _
  $region35: #{autoshape_forward.5} parent=0 // pred_check_branch
    %68 = sbr.rel (0) target = $region37
  $region36: #{autoshape_forward.5} parent=0 // pred_region
    _
  $region37: #{autoshape_forward.5} parent=0 // pred_fallthru
    _
  // Predicated region
  $region38: #{autoshape_forward.5} parent=0 // pred_check
    _
  $region39: #{autoshape_forward.5} parent=0 // pred_check_branch
    %70 = sbr.rel (0) target = $region41
  $region40: #{autoshape_forward.5} parent=0 // pred_region
    _
  $region41: #{autoshape_forward.5} parent=0 // pred_fallthru
    _
  // Predicated region
  $region42: #{autoshape_forward.5} parent=0 // pred_check
    _
  $region43: #{autoshape_forward.5} parent=0 // pred_check_branch
    %72 = sbr.rel (0) target = $region45
  $region44: #{autoshape_forward.5} parent=0 // pred_region
    _
  $region45: #{autoshape_forward.5} parent=0 // pred_fallthru
    _

</llo_original>
